<compile_context>
chip_gen: v6e
topology: v6e:2x2x1
jax: 0.10.0
libtpu: 0.0.40
codegen_flags: <defaults>
</compile_context>

<pallas_src>
import functools

import jax
import jax.numpy as jnp
from jax import lax
from jax.experimental import pallas as pl
from jax.experimental.pallas import tpu as pltpu


# ----------------------------- Pallas kernel -----------------------------

def global_average_kernel(bounds_ref, inv_ref, x_ref, o_ref, *,
                          tp, n_valid, mask_tail, precision):
    """One [TP, TD] tile of points: accumulate per-cloud sums; finalize to means.

    bounds_ref: [B, 2] int32  col 0 = segment start, col 1 = segment end
    inv_ref   : [B, 1] f32    1 / max(lengths, 1)
    x_ref     : [TP, TD]      streamed point-feature tile (native dtype)
    o_ref     : [B, TD] f32   resident accumulator (revisited across row tiles)
    """
    i = pl.program_id(1)                       # row-tile index (reduction axis)

    @pl.when(i == 0)
    def _init():
        o_ref[...] = jnp.zeros_like(o_ref)

    b = bounds_ref.shape[0]
    # [B, TP] one-hot membership mask, lane-dense along the big TP axis.
    cols = i * tp + lax.broadcasted_iota(jnp.int32, (b, tp), 1)       # [B, TP]
    start = bounds_ref[:, 0:1]                                        # [B, 1]
    end = bounds_ref[:, 1:2]                                          # [B, 1]
    onehot = ((cols >= start) & (cols < end)).astype(x_ref.dtype)     # exact 0/1

    x_tile = x_ref[...]
    if mask_tail:
        # Zero out-of-bounds rows of the partial tail tile: a 0 one-hot weight
        # alone is unsafe because 0 * garbage(NaN/Inf) still poisons the MXU.
        rows = i * tp + lax.broadcasted_iota(jnp.int32, x_tile.shape, 0)
        x_tile = jnp.where(rows < n_valid, x_tile, jnp.zeros_like(x_tile))

    # Segment-sum on the MXU: [B, TP] x [TP, TD] -> [B, TD], f32 accumulate.
    o_ref[...] += lax.dot_general(
        onehot, x_tile,
        dimension_numbers=(((1,), (0,)), ((), ())),
        preferred_element_type=jnp.float32,
        precision=precision)

    @pl.when(i == pl.num_programs(1) - 1)
    def _finalize():
        o_ref[...] *= inv_ref[...]             # [B, 1] broadcast -> per-cloud mean


# ----------------------------- wrapper -----------------------------

def _round_down(v, m):
    return (v // m) * m


def global_average_pallas(x, lengths, *, tp=None):
    """Per-cloud mean over the point axis: x [N, D], lengths [B] -> [B, D]."""
    n, d = x.shape
    b = int(lengths.shape[0])
    itemsize = jnp.dtype(x.dtype).itemsize

    # Feature-column split: two blocks when D is large (gives v7x's second core
    # independent, lane-dense work); a single full-D block otherwise.
    if d >= 1024 and d % 256 == 0:
        td, nd = d // 2, 2
    else:
        td, nd = d, 1

    # Point-tile size: ~4 MiB streamed per grid step, double-buffered tile well
    # inside every chip's default scoped-VMEM limit.
    if tp is None:
        tp = (4 << 20) // max(1, td * itemsize)
        tp = _round_down(max(256, min(4096, tp)), 256)
    tp = max(8, _round_down(int(tp), 8))
    if tp >= n:                                # small-N: keep the block inside the array
        tp = n if (n % 8 == 0 or n < 8) else _round_down(n, 8)

    nt = pl.cdiv(n, tp)
    mask_tail = (n % tp) != 0

    lengths = lengths.astype(jnp.int32)
    ends = jnp.cumsum(lengths)
    starts = ends - lengths
    bounds = jnp.stack([starts, ends], axis=1)                          # [B, 2]
    inv_len = (1.0 / jnp.maximum(lengths, 1).astype(jnp.float32))[:, None]  # [B, 1]

    # bf16 inputs (production path) stream + matmul natively (mask is exact 0/1);
    # f32 inputs keep full precision so results match the f32 reference exactly.
    precision = (lax.Precision.HIGHEST if x.dtype == jnp.float32
                 else lax.Precision.DEFAULT)

    cost = pl.CostEstimate(
        flops=2 * n * b * d,
        bytes_accessed=n * d * itemsize + b * d * 4,
        transcendentals=0)

    out = pl.pallas_call(
        functools.partial(global_average_kernel, tp=tp, n_valid=n,
                          mask_tail=mask_tail, precision=precision),
        out_shape=jax.ShapeDtypeStruct((b, d), jnp.float32),
        grid=(nd, nt),
        in_specs=[
            pl.BlockSpec((b, 2), lambda j, i: (0, 0)),      # segment bounds (resident)
            pl.BlockSpec((b, 1), lambda j, i: (0, 0)),      # 1/length       (resident)
            pl.BlockSpec((tp, td), lambda j, i: (i, j)),    # streamed point tile
        ],
        out_specs=pl.BlockSpec((b, td), lambda j, i: (0, j)),  # resident accumulator
        compiler_params=pltpu.CompilerParams(
            dimension_semantics=("parallel", "arbitrary")),
        cost_estimate=cost,
    )(bounds, inv_len, x)

    return out.astype(x.dtype)


def global_average_block_forward(x, lengths):
    """GlobalAverageBlock.forward(x, batch) with lengths = batch.lengths[-1]."""
    return global_average_pallas(x, lengths)


# ----------------------------- pure-JAX reference -----------------------------

def reference_global_average(x, lengths):
    """Mirrors the torch global_average loop (lengths as Python ints)."""
    outs, i0 = [], 0
    xf = x.astype(jnp.float32)
    for length in lengths:
        outs.append(jnp.mean(xf[i0:i0 + length], axis=0))
        i0 += length
    return jnp.stack(outs)


# ----------------------------- main -----------------------------

if __name__ == "__main__":
    key = jax.random.PRNGKey(0)
    k1, k2, k3 = jax.random.split(key, 3)

    # case 1: f32, lane-dense D, N divides the tile exactly (no tail masking)
    lengths1 = [160, 96, 192, 64]                      # B=4, N=512
    x1 = jax.random.normal(k1, (sum(lengths1), 128), jnp.float32)
    out1 = jax.block_until_ready(
        global_average_block_forward(x1, jnp.array(lengths1, jnp.int32)))
    ref1 = reference_global_average(x1, lengths1)
    assert out1.shape == (4, 128) and out1.dtype == x1.dtype, (out1.shape, out1.dtype)
    assert jnp.allclose(out1, ref1, atol=1e-4, rtol=1e-4), \
        float(jnp.max(jnp.abs(out1 - ref1)))

    # case 2: ragged N and small D -> partial tail tile + in-kernel row masking
    lengths2 = [37, 63]                                # B=2, N=100
    x2 = jax.random.normal(k2, (sum(lengths2), 40), jnp.float32)
    out2 = jax.block_until_ready(
        global_average_block_forward(x2, jnp.array(lengths2, jnp.int32)))
    ref2 = reference_global_average(x2, lengths2)
    assert out2.shape == (2, 40), out2.shape
    assert jnp.allclose(out2, ref2, atol=1e-4, rtol=1e-4), \
        float(jnp.max(jnp.abs(out2 - ref2)))

    # case 3: bf16 streaming path, multiple row tiles + tail masking
    lengths3 = [70, 130, 100]                          # B=3, N=300
    x3 = jax.random.normal(k3, (sum(lengths3), 256),
                           jnp.float32).astype(jnp.bfloat16)
    out3 = jax.block_until_ready(
        global_average_pallas(x3, jnp.array(lengths3, jnp.int32), tp=128))
    ref3 = reference_global_average(x3, lengths3)
    assert out3.shape == (3, 256) and out3.dtype == jnp.bfloat16, (out3.shape, out3.dtype)
    assert jnp.allclose(out3.astype(jnp.float32), ref3, atol=1e-2, rtol=1e-2), \
        float(jnp.max(jnp.abs(out3.astype(jnp.float32) - ref3)))

    print("KERNEL_OK")
</pallas_src>

<mosaic_0001>
module attributes {stable_mosaic.version = 11 : i64} {
  func.func @global_average_kernel(%arg0: i32, %arg1: i32, %arg2: memref<4x2xi32, #tpu.memory_space<vmem>>, %arg3: memref<4x1xf32, #tpu.memory_space<vmem>>, %arg4: memref<512x128xf32, #tpu.memory_space<vmem>>, %arg5: memref<4x128xf32, #tpu.memory_space<vmem>>) attributes {dimension_semantics = [#tpu.dimension_semantics<parallel>, #tpu.dimension_semantics<arbitrary>], iteration_bounds = array<i64: 1, 1>, scalar_prefetch = 0 : i64, scratch_operands = 0 : i64, tpu.core_type = #tpu.core_type<tc>, window_params = [{pipeline_mode = #tpu.pipeline_mode<synchronous>, transform_indices = @transform_0, window_bounds = array<i64: 4, 2>}, {pipeline_mode = #tpu.pipeline_mode<synchronous>, transform_indices = @transform_1, window_bounds = array<i64: 4, 1>}, {transform_indices = @transform_2, window_bounds = array<i64: 512, 128>}, {transform_indices = @transform_3, window_bounds = array<i64: 4, 128>}]} {
    %c0_i32 = arith.constant 0 : i32
    %0 = arith.cmpi eq, %arg1, %c0_i32 : i32
    %1 = arith.extui %0 : i1 to i32
    %c0_i32_0 = arith.constant 0 : i32
    %2 = arith.cmpi ne, %1, %c0_i32_0 : i32
    scf.if %2 {
      %cst_11 = arith.constant 0.000000e+00 : f32
      %24 = vector.broadcast %cst_11 : f32 to vector<4x128xf32>
      %c0_12 = arith.constant 0 : index
      %c0_13 = arith.constant 0 : index
      %25 = vector.load %arg5[%c0_12, %c0_13] : memref<4x128xf32, #tpu.memory_space<vmem>>, vector<4x128xf32>
      tpu.vector_store %arg5[%c0_12, %c0_13], %24 {strides = array<i32>} : memref<4x128xf32, #tpu.memory_space<vmem>>, vector<4x128xf32>,
    } else {
    }
    %c512_i32 = arith.constant 512 : i32
    %3 = arith.muli %arg1, %c512_i32 : i32
    %4 = tpu.iota {dimensions = array<i32: 1>} : vector<4x512xi32>
    %5 = vector.broadcast %3 : i32 to vector<4x512xi32>
    %6 = arith.addi %5, %4 : vector<4x512xi32>
    %c0 = arith.constant 0 : index
    %c0_1 = arith.constant 0 : index
    %7 = vector.load %arg2[%c0, %c0_1] : memref<4x2xi32, #tpu.memory_space<vmem>>, vector<4x1xi32>
    %c0_2 = arith.constant 0 : index
    %c1 = arith.constant 1 : index
    %8 = vector.load %arg2[%c0_2, %c1] : memref<4x2xi32, #tpu.memory_space<vmem>>, vector<4x1xi32>
    %9 = vector.broadcast %7 : vector<4x1xi32> to vector<4x512xi32>
    %10 = arith.cmpi sge, %6, %9 : vector<4x512xi32>
    %11 = vector.broadcast %8 : vector<4x1xi32> to vector<4x512xi32>
    %12 = arith.cmpi slt, %6, %11 : vector<4x512xi32>
    %13 = arith.andi %10, %12 : vector<4x512xi1>
    %14 = arith.extui %13 : vector<4x512xi1> to vector<4x512xi32>
    %15 = arith.sitofp %14 : vector<4x512xi32> to vector<4x512xf32>
    %c0_3 = arith.constant 0 : index
    %c0_4 = arith.constant 0 : index
    %16 = vector.load %arg4[%c0_3, %c0_4] : memref<512x128xf32, #tpu.memory_space<vmem>>, vector<512x128xf32>
    %c0_5 = arith.constant 0 : index
    %c0_6 = arith.constant 0 : index
    %17 = vector.load %arg5[%c0_5, %c0_6] : memref<4x128xf32, #tpu.memory_space<vmem>>, vector<4x128xf32>
    %cst = arith.constant dense<0.000000e+00> : vector<4x128xf32>
    %18 = tpu.matmul %15, %16, %cst {dimension_numbers = #tpu.dot_dimension_numbers<[1], [0], [0], [1], [0, 0, 1, 1], [], []>, precision = #tpu.contract_precision<fp32>} : vector<4x512xf32>, vector<512x128xf32>, vector<4x128xf32> -> vector<4x128xf32>
    %19 = arith.addf %17, %18 : vector<4x128xf32>
    %c0_7 = arith.constant 0 : index
    %c0_8 = arith.constant 0 : index
    %20 = vector.load %arg5[%c0_7, %c0_8] : memref<4x128xf32, #tpu.memory_space<vmem>>, vector<4x128xf32>
    tpu.vector_store %arg5[%c0_7, %c0_8], %19 {strides = array<i32>} : memref<4x128xf32, #tpu.memory_space<vmem>>, vector<4x128xf32>,
    %c0_i32_9 = arith.constant 0 : i32
    %21 = arith.cmpi eq, %arg1, %c0_i32_9 : i32
    %22 = arith.extui %21 : i1 to i32
    %c0_i32_10 = arith.constant 0 : i32
    %23 = arith.cmpi ne, %22, %c0_i32_10 : i32
    scf.if %23 {
      %c0_11 = arith.constant 0 : index
      %c0_12 = arith.constant 0 : index
      %24 = vector.load %arg5[%c0_11, %c0_12] : memref<4x128xf32, #tpu.memory_space<vmem>>, vector<4x128xf32>
      %c0_13 = arith.constant 0 : index
      %c0_14 = arith.constant 0 : index
      %25 = vector.load %arg3[%c0_13, %c0_14] : memref<4x1xf32, #tpu.memory_space<vmem>>, vector<4x1xf32>
      %26 = vector.broadcast %25 : vector<4x1xf32> to vector<4x128xf32>
      %27 = arith.mulf %24, %26 : vector<4x128xf32>
      %c0_15 = arith.constant 0 : index
      %c0_16 = arith.constant 0 : index
      %28 = vector.load %arg5[%c0_15, %c0_16] : memref<4x128xf32, #tpu.memory_space<vmem>>, vector<4x128xf32>
      tpu.vector_store %arg5[%c0_15, %c0_16], %27 {strides = array<i32>} : memref<4x128xf32, #tpu.memory_space<vmem>>, vector<4x128xf32>,
    } else {
    }
    return
  }
  func.func @transform_0(%arg0: i32, %arg1: i32) -> (i32, i32) {
    %c0_i32 = arith.constant 0 : i32
    %c0_i32_0 = arith.constant 0 : i32
    %c0_i32_1 = arith.constant 0 : i32
    return %c0_i32, %c0_i32_0 : i32, i32
  }
  func.func @transform_1(%arg0: i32, %arg1: i32) -> (i32, i32) {
    %c0_i32 = arith.constant 0 : i32
    %c0_i32_0 = arith.constant 0 : i32
    %c0_i32_1 = arith.constant 0 : i32
    return %c0_i32, %c0_i32_0 : i32, i32
  }
  func.func @transform_2(%arg0: i32, %arg1: i32) -> (i32, i32) {
    %c0_i32 = arith.constant 0 : i32
    return %arg1, %arg0 : i32, i32
  }
  func.func @transform_3(%arg0: i32, %arg1: i32) -> (i32, i32) {
    %c0_i32 = arith.constant 0 : i32
    %c0_i32_0 = arith.constant 0 : i32
    return %c0_i32, %arg0 : i32, i32
  }
}

</mosaic_0001>

<llo_original>
// kernel: tpu_custom_call.1
$region0: #{tpu_custom_call.1}
  #allocation0 [shape = 'u32[]', space=smem, size = 0x4, offset = 0x4, fixed_abs, tag = 'smem constant byte address 0x4 - core index']
  #allocation1 [shape = 'u32[144,128]{1,0:T(1,128)}', space=vmem, size = 0x12000, scoped, tag = 'internal scratch']
  %s0 = inlined_call_operand.vmem [shape: s32[4,2], index: 0, kind: input, shape index: {}]
  %s1 = inlined_call_operand.vmem [shape: f32[4,1], index: 1, kind: input, shape index: {}]
  %s2 = inlined_call_operand.hbm [shape: f32[512,128], index: 2, kind: input, shape index: {}]
  %s3 = inlined_call_operand.hbm [shape: f32[4,128], index: 3, kind: output, shape index: {}]
  %s4 = sld [smem:[#allocation0]]
  $region34: #{tpu_custom_call.1} parent=0
    _
  %s6 = ssub.s32 1, %s4
  %s7 = scalar_select 0, %s6, %s4
  $region1: #{tpu_custom_call.1} parent=0
    #allocation2 [shape = 'u8[262144]{0}', space=vmem, size = 0x40000, scoped, tag = 'input window, operand 2, single buffered']
    #allocation3 [shape = 's32[1]{0}', space=sflag, size = 0x4, scoped, tag = 'scoped memory for tpu_custom_call.1']
    #allocation4 [shape = 's32[1]{0}', space=sflag, size = 0x4, scoped, tag = 'scoped memory for tpu_custom_call.1']
    #allocation5 [shape = 'u8[2048]{0}', space=vmem, size = 0x800, scoped, tag = 'output window, operand 0, single buffered']
    %8 = vsyncpa [#allocation3], 0
    %9 = vsyncpa [#allocation4], 0
    // Predicated region
    $region2: #{tpu_custom_call.1} parent=1 // pred_check
      _
    $region3: #{tpu_custom_call.1} parent=1 // pred_check_branch
      %11 = sbr.rel (0) target = $region5
    $region4: #{tpu_custom_call.1} parent=1 // pred_region
      _
    $region5: #{tpu_custom_call.1} parent=1 // pred_fallthru
      _
    // Predicated region
    $region6: #{tpu_custom_call.1} parent=1 // pred_check
      _
    $region7: #{tpu_custom_call.1} parent=1 // pred_check_branch
      %13 = sbr.rel (0) target = $region9
    $region8: #{tpu_custom_call.1} parent=1 // pred_region
      _
    $region9: #{tpu_custom_call.1} parent=1 // pred_fallthru
      _
    // Predicated region
    $region10: #{tpu_custom_call.1} parent=1 // pred_check
      _
    $region11: #{tpu_custom_call.1} parent=1 // pred_check_branch
      %15 = sbr.rel (0) target = $region13
    $region12: #{tpu_custom_call.1} parent=1 // pred_region
      %s17 = ssub.s32 8192, 8192
      %18 = vsyncadd [#allocation3], %s17
      %s19 = sshll.u32 [#allocation2], 4
      %s20 = int_to_ptr.vmem [resolvable:$true] %s19
      %25 = dma.hbm_to_vmem [thread:$0]  %s2, 8192, %s20, [#allocation3], 128, 128, 8
    $region13: #{tpu_custom_call.1} parent=1 // pred_fallthru
      _
    // Predicated region
    $region14: #{tpu_custom_call.1} parent=1 // pred_check
      _
    $region15: #{tpu_custom_call.1} parent=1 // pred_check_branch
      %27 = sbr.rel (0) target = $region17
    $region16: #{tpu_custom_call.1} parent=1 // pred_region
      %28 = dma.done [#allocation3], 8192
    $region17: #{tpu_custom_call.1} parent=1 // pred_fallthru
      _
    %p29 = scmp.eq.s32.totalorder 0, 0
    // Predicated region
    $region18: #{tpu_custom_call.1} parent=1 // pred_check
      %p30 = pneg %p29
    $region19: #{tpu_custom_call.1} parent=1 // pred_check_branch
      %32 = sbr.rel (%p30) target = $region21
    $region20: #{tpu_custom_call.1} parent=1 // pred_region
      %33 = vst [vmem:[#allocation5] sm:$0xf] 0.0
    $region21: #{tpu_custom_call.1} parent=1 // pred_fallthru
      _
    %s34 = smul.u32 0, 512
    %v35 = vlaneseq
    %v36 = vand.u32 %v35, 127
    %v37 = vadd.s32 %v36, 128
    %v38 = vadd.s32 %v36, 256
    %v39 = vadd.s32 %v36, 384
    %v40 = vstv %s34
    %v41 = vadd.s32 %v40, %v36
    %v42 = vadd.s32 %v40, %v37
    %v43 = vadd.s32 %v40, %v38
    %v44 = vadd.s32 %v40, %v39
    %v45 = vld [vmem:[%s0] sm:$0xf]
    %46 = vset.pattern.permute.xlu0 0
    %47 = vperm.xlu0 %46, %v45
    %v48 = vpop.permute.xlu0 %47
    %vm49 = vcmp.ge.s32.totalorder %v41, %v48
    %vm50 = vcmp.ge.s32.totalorder %v42, %v48
    %vm51 = vcmp.ge.s32.totalorder %v43, %v48
    %vm52 = vcmp.ge.s32.totalorder %v44, %v48
    %53 = vset.pattern.permute.xlu0 1
    %54 = vperm.xlu0 %53, %v45
    %v55 = vpop.permute.xlu0 %54
    %vm56 = vcmp.lt.s32.totalorder %v41, %v55
    %vm57 = vcmp.lt.s32.totalorder %v42, %v55
    %vm58 = vcmp.lt.s32.totalorder %v43, %v55
    %vm59 = vcmp.lt.s32.totalorder %v44, %v55
    %vm60 = vmand %vm49, %vm56
    %vm61 = vmand %vm50, %vm57
    %vm62 = vmand %vm51, %vm58
    %vm63 = vmand %vm52, %vm59
    %v64 = vsel %vm60, 1, 0
    %v65 = vsel %vm61, 1, 0
    %v66 = vsel %vm62, 1, 0
    %v67 = vsel %vm63, 1, 0
    %v68 = vcvt.s32.f32 %v64
    %v69 = vcvt.s32.f32 %v65
    %v70 = vcvt.s32.f32 %v66
    %v71 = vcvt.s32.f32 %v67
    %v72 = vld [vmem:[#allocation2] sm:$0xff]
    %v73 = vld [vmem:[#allocation2 + $0x8] sm:$0xff]
    %v74 = vld [vmem:[#allocation2 + $0x10] sm:$0xff]
    %v75 = vld [vmem:[#allocation2 + $0x18] sm:$0xff]
    %v76 = vld [vmem:[#allocation2 + $0x20] sm:$0xff]
    %v77 = vld [vmem:[#allocation2 + $0x28] sm:$0xff]
    %v78 = vld [vmem:[#allocation2 + $0x30] sm:$0xff]
    %v79 = vld [vmem:[#allocation2 + $0x38] sm:$0xff]
    %v80 = vld [vmem:[#allocation2 + $0x40] sm:$0xff]
    %v81 = vld [vmem:[#allocation2 + $0x48] sm:$0xff]
    %v82 = vld [vmem:[#allocation2 + $0x50] sm:$0xff]
    %v83 = vld [vmem:[#allocation2 + $0x58] sm:$0xff]
    %v84 = vld [vmem:[#allocation2 + $0x60] sm:$0xff]
    %v85 = vld [vmem:[#allocation2 + $0x68] sm:$0xff]
    %v86 = vld [vmem:[#allocation2 + $0x70] sm:$0xff]
    %v87 = vld [vmem:[#allocation2 + $0x78] sm:$0xff]
    %v88 = vld [vmem:[#allocation2 + $0x80] sm:$0xff]
    %v89 = vld [vmem:[#allocation2 + $0x88] sm:$0xff]
    %v90 = vld [vmem:[#allocation2 + $0x90] sm:$0xff]
    %v91 = vld [vmem:[#allocation2 + $0x98] sm:$0xff]
    %v92 = vld [vmem:[#allocation2 + $0xa0] sm:$0xff]
    %v93 = vld [vmem:[#allocation2 + $0xa8] sm:$0xff]
    %v94 = vld [vmem:[#allocation2 + $0xb0] sm:$0xff]
    %v95 = vld [vmem:[#allocation2 + $0xb8] sm:$0xff]
    %v96 = vld [vmem:[#allocation2 + $0xc0] sm:$0xff]
    %v97 = vld [vmem:[#allocation2 + $0xc8] sm:$0xff]
    %v98 = vld [vmem:[#allocation2 + $0xd0] sm:$0xff]
    %v99 = vld [vmem:[#allocation2 + $0xd8] sm:$0xff]
    %v100 = vld [vmem:[#allocation2 + $0xe0] sm:$0xff]
    %v101 = vld [vmem:[#allocation2 + $0xe8] sm:$0xff]
    %v102 = vld [vmem:[#allocation2 + $0xf0] sm:$0xff]
    %v103 = vld [vmem:[#allocation2 + $0xf8] sm:$0xff]
    %v104 = vld [vmem:[#allocation2 + $0x100] sm:$0xff]
    %v105 = vld [vmem:[#allocation2 + $0x108] sm:$0xff]
    %v106 = vld [vmem:[#allocation2 + $0x110] sm:$0xff]
    %v107 = vld [vmem:[#allocation2 + $0x118] sm:$0xff]
    %v108 = vld [vmem:[#allocation2 + $0x120] sm:$0xff]
    %v109 = vld [vmem:[#allocation2 + $0x128] sm:$0xff]
    %v110 = vld [vmem:[#allocation2 + $0x130] sm:$0xff]
    %v111 = vld [vmem:[#allocation2 + $0x138] sm:$0xff]
    %v112 = vld [vmem:[#allocation2 + $0x140] sm:$0xff]
    %v113 = vld [vmem:[#allocation2 + $0x148] sm:$0xff]
    %v114 = vld [vmem:[#allocation2 + $0x150] sm:$0xff]
    %v115 = vld [vmem:[#allocation2 + $0x158] sm:$0xff]
    %v116 = vld [vmem:[#allocation2 + $0x160] sm:$0xff]
    %v117 = vld [vmem:[#allocation2 + $0x168] sm:$0xff]
    %v118 = vld [vmem:[#allocation2 + $0x170] sm:$0xff]
    %v119 = vld [vmem:[#allocation2 + $0x178] sm:$0xff]
    %v120 = vld [vmem:[#allocation2 + $0x180] sm:$0xff]
    %v121 = vld [vmem:[#allocation2 + $0x188] sm:$0xff]
    %v122 = vld [vmem:[#allocation2 + $0x190] sm:$0xff]
    %v123 = vld [vmem:[#allocation2 + $0x198] sm:$0xff]
    %v124 = vld [vmem:[#allocation2 + $0x1a0] sm:$0xff]
    %v125 = vld [vmem:[#allocation2 + $0x1a8] sm:$0xff]
    %v126 = vld [vmem:[#allocation2 + $0x1b0] sm:$0xff]
    %v127 = vld [vmem:[#allocation2 + $0x1b8] sm:$0xff]
    %v128 = vld [vmem:[#allocation2 + $0x1c0] sm:$0xff]
    %v129 = vld [vmem:[#allocation2 + $0x1c8] sm:$0xff]
    %v130 = vld [vmem:[#allocation2 + $0x1d0] sm:$0xff]
    %v131 = vld [vmem:[#allocation2 + $0x1d8] sm:$0xff]
    %v132 = vld [vmem:[#allocation2 + $0x1e0] sm:$0xff]
    %v133 = vld [vmem:[#allocation2 + $0x1e8] sm:$0xff]
    %v134 = vld [vmem:[#allocation2 + $0x1f0] sm:$0xff]
    %v135 = vld [vmem:[#allocation2 + $0x1f8] sm:$0xff]
    %v136 = vld [vmem:[#allocation5] sm:$0xf]
    %137 = vmatprep.subr.mxu0 0.0
    %v138 = vand.u32 %v87, 4294901760
    %139 = vmatpush1.msra.mxu0 %v138
    %140 = vmatprep.subr.mxu0 0.0
    %v141 = vand.u32 %v86, 4294901760
    %142 = vmatpush1.msra.mxu0 %v141
    %143 = vmatprep.subr.mxu0 0.0
    %v144 = vand.u32 %v85, 4294901760
    %145 = vmatpush1.msra.mxu0 %v144
    %146 = vmatprep.subr.mxu0 0.0
    %v147 = vand.u32 %v84, 4294901760
    %148 = vmatpush1.msra.mxu0 %v147
    %149 = vmatprep.subr.mxu0 0.0
    %v150 = vand.u32 %v83, 4294901760
    %151 = vmatpush1.msra.mxu0 %v150
    %152 = vmatprep.subr.mxu0 0.0
    %v153 = vand.u32 %v82, 4294901760
    %154 = vmatpush1.msra.mxu0 %v153
    %155 = vmatprep.subr.mxu0 0.0
    %v156 = vand.u32 %v81, 4294901760
    %157 = vmatpush1.msra.mxu0 %v156
    %158 = vmatprep.subr.mxu0 0.0
    %v159 = vand.u32 %v80, 4294901760
    %160 = vmatpush1.msra.mxu0 %v159
    %161 = vmatprep.subr.mxu0 0.0
    %v162 = vand.u32 %v79, 4294901760
    %163 = vmatpush1.msra.mxu0 %v162
    %164 = vmatprep.subr.mxu0 0.0
    %v165 = vand.u32 %v78, 4294901760
    %166 = vmatpush1.msra.mxu0 %v165
    %167 = vmatprep.subr.mxu0 0.0
    %v168 = vand.u32 %v77, 4294901760
    %169 = vmatpush1.msra.mxu0 %v168
    %170 = vmatprep.subr.mxu0 0.0
    %v171 = vand.u32 %v76, 4294901760
    %172 = vmatpush1.msra.mxu0 %v171
    %173 = vmatprep.subr.mxu0 0.0
    %v174 = vand.u32 %v75, 4294901760
    %175 = vmatpush1.msra.mxu0 %v174
    %176 = vmatprep.subr.mxu0 0.0
    %v177 = vand.u32 %v74, 4294901760
    %178 = vmatpush1.msra.mxu0 %v177
    %179 = vmatprep.subr.mxu0 0.0
    %v180 = vand.u32 %v73, 4294901760
    %181 = vmatpush1.msra.mxu0 %v180
    %182 = vmatprep.subr.mxu0 0.0
    %v183 = vand.u32 %v72, 4294901760
    %184 = vmatpush1.msra.mxu0 %v183
    %185 = vmatprep.subr.mxu0 0.0
    %v186 = vand.u32 %v103, 4294901760
    %187 = vmatpush2.msra.mxu0 %v186
    %188 = vmatprep.subr.mxu0 0.0
    %v189 = vand.u32 %v102, 4294901760
    %190 = vmatpush2.msra.mxu0 %v189
    %191 = vmatprep.subr.mxu0 0.0
    %v192 = vand.u32 %v101, 4294901760
    %193 = vmatpush2.msra.mxu0 %v192
    %194 = vmatprep.subr.mxu0 0.0
    %v195 = vand.u32 %v100, 4294901760
    %196 = vmatpush2.msra.mxu0 %v195
    %197 = vmatprep.subr.mxu0 0.0
    %v198 = vand.u32 %v99, 4294901760
    %199 = vmatpush2.msra.mxu0 %v198
    %200 = vmatprep.subr.mxu0 0.0
    %v201 = vand.u32 %v98, 4294901760
    %202 = vmatpush2.msra.mxu0 %v201
    %203 = vmatprep.subr.mxu0 0.0
    %v204 = vand.u32 %v97, 4294901760
    %205 = vmatpush2.msra.mxu0 %v204
    %206 = vmatprep.subr.mxu0 0.0
    %v207 = vand.u32 %v96, 4294901760
    %208 = vmatpush2.msra.mxu0 %v207
    %209 = vmatprep.subr.mxu0 0.0
    %v210 = vand.u32 %v95, 4294901760
    %211 = vmatpush2.msra.mxu0 %v210
    %212 = vmatprep.subr.mxu0 0.0
    %v213 = vand.u32 %v94, 4294901760
    %214 = vmatpush2.msra.mxu0 %v213
    %215 = vmatprep.subr.mxu0 0.0
    %v216 = vand.u32 %v93, 4294901760
    %217 = vmatpush2.msra.mxu0 %v216
    %218 = vmatprep.subr.mxu0 0.0
    %v219 = vand.u32 %v92, 4294901760
    %220 = vmatpush2.msra.mxu0 %v219
    %221 = vmatprep.subr.mxu0 0.0
    %v222 = vand.u32 %v91, 4294901760
    %223 = vmatpush2.msra.mxu0 %v222
    %224 = vmatprep.subr.mxu0 0.0
    %v225 = vand.u32 %v90, 4294901760
    %226 = vmatpush2.msra.mxu0 %v225
    %227 = vmatprep.subr.mxu0 0.0
    %v228 = vand.u32 %v89, 4294901760
    %229 = vmatpush2.msra.mxu0 %v228
    %230 = vmatprep.subr.mxu0 0.0
    %v231 = vand.u32 %v88, 4294901760
    %232 = vmatpush2.msra.mxu0 %v231
    %v233 = vand.u32 %v69, 4294901760
    %v234 = vsub.f32 %v69, %v233
    %v235 = vand.u32 %v234, 4294901760
    %v236 = vsub.f32 %v234, %v235
    %v237 = vand.u32 %v236, 4294901760
    %238 = vmatprep.mubr.f32.mxu0 %v237
    %v239 = vand.u32 %v68, 4294901760
    %v240 = vsub.f32 %v68, %v239
    %v241 = vand.u32 %v240, 4294901760
    %v242 = vsub.f32 %v240, %v241
    %v243 = vand.u32 %v242, 4294901760
    %244 = vmatmul.mubr.f32.gmra.mxu0 %v243
    %v245 = vpop.f32.mrf.mxu0
    %v246 = vadd.f32 0.0, %v245
    %v247 = vpop.f32.mrf.mxu0
    %248 = vdwg.mxu0
    %249 = vmatprep.subr.mxu0 0.0
    %v250 = vand.u32 %v87, 4294901760
    %v251 = vsub.f32 %v87, %v250
    %v252 = vand.u32 %v251, 4294901760
    %v253 = vsub.f32 %v251, %v252
    %v254 = vand.u32 %v253, 4294901760
    %255 = vmatpush1.msra.mxu0 %v254
    %256 = vmatprep.subr.mxu0 0.0
    %v257 = vand.u32 %v86, 4294901760
    %v258 = vsub.f32 %v86, %v257
    %v259 = vand.u32 %v258, 4294901760
    %v260 = vsub.f32 %v258, %v259
    %v261 = vand.u32 %v260, 4294901760
    %262 = vmatpush1.msra.mxu0 %v261
    %263 = vmatprep.subr.mxu0 0.0
    %v264 = vand.u32 %v85, 4294901760
    %v265 = vsub.f32 %v85, %v264
    %v266 = vand.u32 %v265, 4294901760
    %v267 = vsub.f32 %v265, %v266
    %v268 = vand.u32 %v267, 4294901760
    %269 = vmatpush1.msra.mxu0 %v268
    %270 = vmatprep.subr.mxu0 0.0
    %v271 = vand.u32 %v84, 4294901760
    %v272 = vsub.f32 %v84, %v271
    %v273 = vand.u32 %v272, 4294901760
    %v274 = vsub.f32 %v272, %v273
    %v275 = vand.u32 %v274, 4294901760
    %276 = vmatpush1.msra.mxu0 %v275
    %277 = vmatprep.subr.mxu0 0.0
    %v278 = vand.u32 %v83, 4294901760
    %v279 = vsub.f32 %v83, %v278
    %v280 = vand.u32 %v279, 4294901760
    %v281 = vsub.f32 %v279, %v280
    %v282 = vand.u32 %v281, 4294901760
    %283 = vmatpush1.msra.mxu0 %v282
    %284 = vmatprep.subr.mxu0 0.0
    %v285 = vand.u32 %v82, 4294901760
    %v286 = vsub.f32 %v82, %v285
    %v287 = vand.u32 %v286, 4294901760
    %v288 = vsub.f32 %v286, %v287
    %v289 = vand.u32 %v288, 4294901760
    %290 = vmatpush1.msra.mxu0 %v289
    %291 = vmatprep.subr.mxu0 0.0
    %v292 = vand.u32 %v81, 4294901760
    %v293 = vsub.f32 %v81, %v292
    %v294 = vand.u32 %v293, 4294901760
    %v295 = vsub.f32 %v293, %v294
    %v296 = vand.u32 %v295, 4294901760
    %297 = vmatpush1.msra.mxu0 %v296
    %298 = vmatprep.subr.mxu0 0.0
    %v299 = vand.u32 %v80, 4294901760
    %v300 = vsub.f32 %v80, %v299
    %v301 = vand.u32 %v300, 4294901760
    %v302 = vsub.f32 %v300, %v301
    %v303 = vand.u32 %v302, 4294901760
    %304 = vmatpush1.msra.mxu0 %v303
    %305 = vmatprep.subr.mxu0 0.0
    %v306 = vand.u32 %v79, 4294901760
    %v307 = vsub.f32 %v79, %v306
    %v308 = vand.u32 %v307, 4294901760
    %v309 = vsub.f32 %v307, %v308
    %v310 = vand.u32 %v309, 4294901760
    %311 = vmatpush1.msra.mxu0 %v310
    %312 = vmatprep.subr.mxu0 0.0
    %v313 = vand.u32 %v78, 4294901760
    %v314 = vsub.f32 %v78, %v313
    %v315 = vand.u32 %v314, 4294901760
    %v316 = vsub.f32 %v314, %v315
    %v317 = vand.u32 %v316, 4294901760
    %318 = vmatpush1.msra.mxu0 %v317
    %319 = vmatprep.subr.mxu0 0.0
    %v320 = vand.u32 %v77, 4294901760
    %v321 = vsub.f32 %v77, %v320
    %v322 = vand.u32 %v321, 4294901760
    %v323 = vsub.f32 %v321, %v322
    %v324 = vand.u32 %v323, 4294901760
    %325 = vmatpush1.msra.mxu0 %v324
    %326 = vmatprep.subr.mxu0 0.0
    %v327 = vand.u32 %v76, 4294901760
    %v328 = vsub.f32 %v76, %v327
    %v329 = vand.u32 %v328, 4294901760
    %v330 = vsub.f32 %v328, %v329
    %v331 = vand.u32 %v330, 4294901760
    %332 = vmatpush1.msra.mxu0 %v331
    %333 = vmatprep.subr.mxu0 0.0
    %v334 = vand.u32 %v75, 4294901760
    %v335 = vsub.f32 %v75, %v334
    %v336 = vand.u32 %v335, 4294901760
    %v337 = vsub.f32 %v335, %v336
    %v338 = vand.u32 %v337, 4294901760
    %339 = vmatpush1.msra.mxu0 %v338
    %340 = vmatprep.subr.mxu0 0.0
    %v341 = vand.u32 %v74, 4294901760
    %v342 = vsub.f32 %v74, %v341
    %v343 = vand.u32 %v342, 4294901760
    %v344 = vsub.f32 %v342, %v343
    %v345 = vand.u32 %v344, 4294901760
    %346 = vmatpush1.msra.mxu0 %v345
    %347 = vmatprep.subr.mxu0 0.0
    %v348 = vand.u32 %v73, 4294901760
    %v349 = vsub.f32 %v73, %v348
    %v350 = vand.u32 %v349, 4294901760
    %v351 = vsub.f32 %v349, %v350
    %v352 = vand.u32 %v351, 4294901760
    %353 = vmatpush1.msra.mxu0 %v352
    %354 = vmatprep.subr.mxu0 0.0
    %v355 = vand.u32 %v72, 4294901760
    %v356 = vsub.f32 %v72, %v355
    %v357 = vand.u32 %v356, 4294901760
    %v358 = vsub.f32 %v356, %v357
    %v359 = vand.u32 %v358, 4294901760
    %360 = vmatpush1.msra.mxu0 %v359
    %361 = vmatprep.subr.mxu0 0.0
    %v362 = vand.u32 %v103, 4294901760
    %v363 = vsub.f32 %v103, %v362
    %v364 = vand.u32 %v363, 4294901760
    %v365 = vsub.f32 %v363, %v364
    %v366 = vand.u32 %v365, 4294901760
    %367 = vmatpush2.msra.mxu0 %v366
    %368 = vmatprep.subr.mxu0 0.0
    %v369 = vand.u32 %v102, 4294901760
    %v370 = vsub.f32 %v102, %v369
    %v371 = vand.u32 %v370, 4294901760
    %v372 = vsub.f32 %v370, %v371
    %v373 = vand.u32 %v372, 4294901760
    %374 = vmatpush2.msra.mxu0 %v373
    %375 = vmatprep.subr.mxu0 0.0
    %v376 = vand.u32 %v101, 4294901760
    %v377 = vsub.f32 %v101, %v376
    %v378 = vand.u32 %v377, 4294901760
    %v379 = vsub.f32 %v377, %v378
    %v380 = vand.u32 %v379, 4294901760
    %381 = vmatpush2.msra.mxu0 %v380
    %382 = vmatprep.subr.mxu0 0.0
    %v383 = vand.u32 %v100, 4294901760
    %v384 = vsub.f32 %v100, %v383
    %v385 = vand.u32 %v384, 4294901760
    %v386 = vsub.f32 %v384, %v385
    %v387 = vand.u32 %v386, 4294901760
    %388 = vmatpush2.msra.mxu0 %v387
    %389 = vmatprep.subr.mxu0 0.0
    %v390 = vand.u32 %v99, 4294901760
    %v391 = vsub.f32 %v99, %v390
    %v392 = vand.u32 %v391, 4294901760
    %v393 = vsub.f32 %v391, %v392
    %v394 = vand.u32 %v393, 4294901760
    %395 = vmatpush2.msra.mxu0 %v394
    %396 = vmatprep.subr.mxu0 0.0
    %v397 = vand.u32 %v98, 4294901760
    %v398 = vsub.f32 %v98, %v397
    %v399 = vand.u32 %v398, 4294901760
    %v400 = vsub.f32 %v398, %v399
    %v401 = vand.u32 %v400, 4294901760
    %402 = vmatpush2.msra.mxu0 %v401
    %403 = vmatprep.subr.mxu0 0.0
    %v404 = vand.u32 %v97, 4294901760
    %v405 = vsub.f32 %v97, %v404
    %v406 = vand.u32 %v405, 4294901760
    %v407 = vsub.f32 %v405, %v406
    %v408 = vand.u32 %v407, 4294901760
    %409 = vmatpush2.msra.mxu0 %v408
    %410 = vmatprep.subr.mxu0 0.0
    %v411 = vand.u32 %v96, 4294901760
    %v412 = vsub.f32 %v96, %v411
    %v413 = vand.u32 %v412, 4294901760
    %v414 = vsub.f32 %v412, %v413
    %v415 = vand.u32 %v414, 4294901760
    %416 = vmatpush2.msra.mxu0 %v415
    %417 = vmatprep.subr.mxu0 0.0
    %v418 = vand.u32 %v95, 4294901760
    %v419 = vsub.f32 %v95, %v418
    %v420 = vand.u32 %v419, 4294901760
    %v421 = vsub.f32 %v419, %v420
    %v422 = vand.u32 %v421, 4294901760
    %423 = vmatpush2.msra.mxu0 %v422
    %424 = vmatprep.subr.mxu0 0.0
    %v425 = vand.u32 %v94, 4294901760
    %v426 = vsub.f32 %v94, %v425
    %v427 = vand.u32 %v426, 4294901760
    %v428 = vsub.f32 %v426, %v427
    %v429 = vand.u32 %v428, 4294901760
    %430 = vmatpush2.msra.mxu0 %v429
    %431 = vmatprep.subr.mxu0 0.0
    %v432 = vand.u32 %v93, 4294901760
    %v433 = vsub.f32 %v93, %v432
    %v434 = vand.u32 %v433, 4294901760
    %v435 = vsub.f32 %v433, %v434
    %v436 = vand.u32 %v435, 4294901760
    %437 = vmatpush2.msra.mxu0 %v436
    %438 = vmatprep.subr.mxu0 0.0
    %v439 = vand.u32 %v92, 4294901760
    %v440 = vsub.f32 %v92, %v439
    %v441 = vand.u32 %v440, 4294901760
    %v442 = vsub.f32 %v440, %v441
    %v443 = vand.u32 %v442, 4294901760
    %444 = vmatpush2.msra.mxu0 %v443
    %445 = vmatprep.subr.mxu0 0.0
    %v446 = vand.u32 %v91, 4294901760
    %v447 = vsub.f32 %v91, %v446
    %v448 = vand.u32 %v447, 4294901760
    %v449 = vsub.f32 %v447, %v448
    %v450 = vand.u32 %v449, 4294901760
    %451 = vmatpush2.msra.mxu0 %v450
    %452 = vmatprep.subr.mxu0 0.0
    %v453 = vand.u32 %v90, 4294901760
    %v454 = vsub.f32 %v90, %v453
    %v455 = vand.u32 %v454, 4294901760
    %v456 = vsub.f32 %v454, %v455
    %v457 = vand.u32 %v456, 4294901760
    %458 = vmatpush2.msra.mxu0 %v457
    %459 = vmatprep.subr.mxu0 0.0
    %v460 = vand.u32 %v89, 4294901760
    %v461 = vsub.f32 %v89, %v460
    %v462 = vand.u32 %v461, 4294901760
    %v463 = vsub.f32 %v461, %v462
    %v464 = vand.u32 %v463, 4294901760
    %465 = vmatpush2.msra.mxu0 %v464
    %466 = vmatprep.subr.mxu0 0.0
    %v467 = vand.u32 %v88, 4294901760
    %v468 = vsub.f32 %v88, %v467
    %v469 = vand.u32 %v468, 4294901760
    %v470 = vsub.f32 %v468, %v469
    %v471 = vand.u32 %v470, 4294901760
    %472 = vmatpush2.msra.mxu0 %v471
    %v473 = vand.u32 %v69, 4294901760
    %474 = vmatprep.mubr.f32.mxu0 %v473
    %v475 = vand.u32 %v68, 4294901760
    %476 = vmatmul.mubr.f32.gmra.mxu0 %v475
    %v477 = vpop.f32.mrf.mxu0
    %v478 = vadd.f32 %v246, %v477
    %v479 = vpop.f32.mrf.mxu0
    %480 = vdwg.mxu0
    %481 = vmatprep.subr.mxu0 0.0
    %v482 = vand.u32 %v87, 4294901760
    %v483 = vsub.f32 %v87, %v482
    %484 = vmatpush1.msra.mxu0 %v483
    %485 = vmatprep.subr.mxu0 0.0
    %v486 = vand.u32 %v86, 4294901760
    %v487 = vsub.f32 %v86, %v486
    %488 = vmatpush1.msra.mxu0 %v487
    %489 = vmatprep.subr.mxu0 0.0
    %v490 = vand.u32 %v85, 4294901760
    %v491 = vsub.f32 %v85, %v490
    %492 = vmatpush1.msra.mxu0 %v491
    %493 = vmatprep.subr.mxu0 0.0
    %v494 = vand.u32 %v84, 4294901760
    %v495 = vsub.f32 %v84, %v494
    %496 = vmatpush1.msra.mxu0 %v495
    %497 = vmatprep.subr.mxu0 0.0
    %v498 = vand.u32 %v83, 4294901760
    %v499 = vsub.f32 %v83, %v498
    %500 = vmatpush1.msra.mxu0 %v499
    %501 = vmatprep.subr.mxu0 0.0
    %v502 = vand.u32 %v82, 4294901760
    %v503 = vsub.f32 %v82, %v502
    %504 = vmatpush1.msra.mxu0 %v503
    %505 = vmatprep.subr.mxu0 0.0
    %v506 = vand.u32 %v81, 4294901760
    %v507 = vsub.f32 %v81, %v506
    %508 = vmatpush1.msra.mxu0 %v507
    %509 = vmatprep.subr.mxu0 0.0
    %v510 = vand.u32 %v80, 4294901760
    %v511 = vsub.f32 %v80, %v510
    %512 = vmatpush1.msra.mxu0 %v511
    %513 = vmatprep.subr.mxu0 0.0
    %v514 = vand.u32 %v79, 4294901760
    %v515 = vsub.f32 %v79, %v514
    %516 = vmatpush1.msra.mxu0 %v515
    %517 = vmatprep.subr.mxu0 0.0
    %v518 = vand.u32 %v78, 4294901760
    %v519 = vsub.f32 %v78, %v518
    %520 = vmatpush1.msra.mxu0 %v519
    %521 = vmatprep.subr.mxu0 0.0
    %v522 = vand.u32 %v77, 4294901760
    %v523 = vsub.f32 %v77, %v522
    %524 = vmatpush1.msra.mxu0 %v523
    %525 = vmatprep.subr.mxu0 0.0
    %v526 = vand.u32 %v76, 4294901760
    %v527 = vsub.f32 %v76, %v526
    %528 = vmatpush1.msra.mxu0 %v527
    %529 = vmatprep.subr.mxu0 0.0
    %v530 = vand.u32 %v75, 4294901760
    %v531 = vsub.f32 %v75, %v530
    %532 = vmatpush1.msra.mxu0 %v531
    %533 = vmatprep.subr.mxu0 0.0
    %v534 = vand.u32 %v74, 4294901760
    %v535 = vsub.f32 %v74, %v534
    %536 = vmatpush1.msra.mxu0 %v535
    %537 = vmatprep.subr.mxu0 0.0
    %v538 = vand.u32 %v73, 4294901760
    %v539 = vsub.f32 %v73, %v538
    %540 = vmatpush1.msra.mxu0 %v539
    %541 = vmatprep.subr.mxu0 0.0
    %v542 = vand.u32 %v72, 4294901760
    %v543 = vsub.f32 %v72, %v542
    %544 = vmatpush1.msra.mxu0 %v543
    %545 = vmatprep.subr.mxu0 0.0
    %v546 = vand.u32 %v103, 4294901760
    %v547 = vsub.f32 %v103, %v546
    %548 = vmatpush2.msra.mxu0 %v547
    %549 = vmatprep.subr.mxu0 0.0
    %v550 = vand.u32 %v102, 4294901760
    %v551 = vsub.f32 %v102, %v550
    %552 = vmatpush2.msra.mxu0 %v551
    %553 = vmatprep.subr.mxu0 0.0
    %v554 = vand.u32 %v101, 4294901760
    %v555 = vsub.f32 %v101, %v554
    %556 = vmatpush2.msra.mxu0 %v555
    %557 = vmatprep.subr.mxu0 0.0
    %v558 = vand.u32 %v100, 4294901760
    %v559 = vsub.f32 %v100, %v558
    %560 = vmatpush2.msra.mxu0 %v559
    %561 = vmatprep.subr.mxu0 0.0
    %v562 = vand.u32 %v99, 4294901760
    %v563 = vsub.f32 %v99, %v562
    %564 = vmatpush2.msra.mxu0 %v563
    %565 = vmatprep.subr.mxu0 0.0
    %v566 = vand.u32 %v98, 4294901760
    %v567 = vsub.f32 %v98, %v566
    %568 = vmatpush2.msra.mxu0 %v567
    %569 = vmatprep.subr.mxu0 0.0
    %v570 = vand.u32 %v97, 4294901760
    %v571 = vsub.f32 %v97, %v570
    %572 = vmatpush2.msra.mxu0 %v571
    %573 = vmatprep.subr.mxu0 0.0
    %v574 = vand.u32 %v96, 4294901760
    %v575 = vsub.f32 %v96, %v574
    %576 = vmatpush2.msra.mxu0 %v575
    %577 = vmatprep.subr.mxu0 0.0
    %v578 = vand.u32 %v95, 4294901760
    %v579 = vsub.f32 %v95, %v578
    %580 = vmatpush2.msra.mxu0 %v579
    %581 = vmatprep.subr.mxu0 0.0
    %v582 = vand.u32 %v94, 4294901760
    %v583 = vsub.f32 %v94, %v582
    %584 = vmatpush2.msra.mxu0 %v583
    %585 = vmatprep.subr.mxu0 0.0
    %v586 = vand.u32 %v93, 4294901760
    %v587 = vsub.f32 %v93, %v586
    %588 = vmatpush2.msra.mxu0 %v587
    %589 = vmatprep.subr.mxu0 0.0
    %v590 = vand.u32 %v92, 4294901760
    %v591 = vsub.f32 %v92, %v590
    %592 = vmatpush2.msra.mxu0 %v591
    %593 = vmatprep.subr.mxu0 0.0
    %v594 = vand.u32 %v91, 4294901760
    %v595 = vsub.f32 %v91, %v594
    %596 = vmatpush2.msra.mxu0 %v595
    %597 = vmatprep.subr.mxu0 0.0
    %v598 = vand.u32 %v90, 4294901760
    %v599 = vsub.f32 %v90, %v598
    %600 = vmatpush2.msra.mxu0 %v599
    %601 = vmatprep.subr.mxu0 0.0
    %v602 = vand.u32 %v89, 4294901760
    %v603 = vsub.f32 %v89, %v602
    %604 = vmatpush2.msra.mxu0 %v603
    %605 = vmatprep.subr.mxu0 0.0
    %v606 = vand.u32 %v88, 4294901760
    %v607 = vsub.f32 %v88, %v606
    %608 = vmatpush2.msra.mxu0 %v607
    %v609 = vand.u32 %v69, 4294901760
    %v610 = vsub.f32 %v69, %v609
    %611 = vmatprep.mubr.f32.mxu0 %v610
    %v612 = vand.u32 %v68, 4294901760
    %v613 = vsub.f32 %v68, %v612
    %614 = vmatmul.mubr.f32.gmra.mxu0 %v613
    %v615 = vpop.f32.mrf.mxu0
    %v616 = vadd.f32 %v478, %v615
    %v617 = vpop.f32.mrf.mxu0
    %618 = vdwg.mxu0
    %619 = vmatprep.subr.mxu0 0.0
    %v620 = vand.u32 %v87, 4294901760
    %621 = vmatpush1.msra.mxu0 %v620
    %622 = vmatprep.subr.mxu0 0.0
    %v623 = vand.u32 %v86, 4294901760
    %624 = vmatpush1.msra.mxu0 %v623
    %625 = vmatprep.subr.mxu0 0.0
    %v626 = vand.u32 %v85, 4294901760
    %627 = vmatpush1.msra.mxu0 %v626
    %628 = vmatprep.subr.mxu0 0.0
    %v629 = vand.u32 %v84, 4294901760
    %630 = vmatpush1.msra.mxu0 %v629
    %631 = vmatprep.subr.mxu0 0.0
    %v632 = vand.u32 %v83, 4294901760
    %633 = vmatpush1.msra.mxu0 %v632
    %634 = vmatprep.subr.mxu0 0.0
    %v635 = vand.u32 %v82, 4294901760
    %636 = vmatpush1.msra.mxu0 %v635
    %637 = vmatprep.subr.mxu0 0.0
    %v638 = vand.u32 %v81, 4294901760
    %639 = vmatpush1.msra.mxu0 %v638
    %640 = vmatprep.subr.mxu0 0.0
    %v641 = vand.u32 %v80, 4294901760
    %642 = vmatpush1.msra.mxu0 %v641
    %643 = vmatprep.subr.mxu0 0.0
    %v644 = vand.u32 %v79, 4294901760
    %645 = vmatpush1.msra.mxu0 %v644
    %646 = vmatprep.subr.mxu0 0.0
    %v647 = vand.u32 %v78, 4294901760
    %648 = vmatpush1.msra.mxu0 %v647
    %649 = vmatprep.subr.mxu0 0.0
    %v650 = vand.u32 %v77, 4294901760
    %651 = vmatpush1.msra.mxu0 %v650
    %652 = vmatprep.subr.mxu0 0.0
    %v653 = vand.u32 %v76, 4294901760
    %654 = vmatpush1.msra.mxu0 %v653
    %655 = vmatprep.subr.mxu0 0.0
    %v656 = vand.u32 %v75, 4294901760
    %657 = vmatpush1.msra.mxu0 %v656
    %658 = vmatprep.subr.mxu0 0.0
    %v659 = vand.u32 %v74, 4294901760
    %660 = vmatpush1.msra.mxu0 %v659
    %661 = vmatprep.subr.mxu0 0.0
    %v662 = vand.u32 %v73, 4294901760
    %663 = vmatpush1.msra.mxu0 %v662
    %664 = vmatprep.subr.mxu0 0.0
    %v665 = vand.u32 %v72, 4294901760
    %666 = vmatpush1.msra.mxu0 %v665
    %667 = vmatprep.subr.mxu0 0.0
    %v668 = vand.u32 %v103, 4294901760
    %669 = vmatpush2.msra.mxu0 %v668
    %670 = vmatprep.subr.mxu0 0.0
    %v671 = vand.u32 %v102, 4294901760
    %672 = vmatpush2.msra.mxu0 %v671
    %673 = vmatprep.subr.mxu0 0.0
    %v674 = vand.u32 %v101, 4294901760
    %675 = vmatpush2.msra.mxu0 %v674
    %676 = vmatprep.subr.mxu0 0.0
    %v677 = vand.u32 %v100, 4294901760
    %678 = vmatpush2.msra.mxu0 %v677
    %679 = vmatprep.subr.mxu0 0.0
    %v680 = vand.u32 %v99, 4294901760
    %681 = vmatpush2.msra.mxu0 %v680
    %682 = vmatprep.subr.mxu0 0.0
    %v683 = vand.u32 %v98, 4294901760
    %684 = vmatpush2.msra.mxu0 %v683
    %685 = vmatprep.subr.mxu0 0.0
    %v686 = vand.u32 %v97, 4294901760
    %687 = vmatpush2.msra.mxu0 %v686
    %688 = vmatprep.subr.mxu0 0.0
    %v689 = vand.u32 %v96, 4294901760
    %690 = vmatpush2.msra.mxu0 %v689
    %691 = vmatprep.subr.mxu0 0.0
    %v692 = vand.u32 %v95, 4294901760
    %693 = vmatpush2.msra.mxu0 %v692
    %694 = vmatprep.subr.mxu0 0.0
    %v695 = vand.u32 %v94, 4294901760
    %696 = vmatpush2.msra.mxu0 %v695
    %697 = vmatprep.subr.mxu0 0.0
    %v698 = vand.u32 %v93, 4294901760
    %699 = vmatpush2.msra.mxu0 %v698
    %700 = vmatprep.subr.mxu0 0.0
    %v701 = vand.u32 %v92, 4294901760
    %702 = vmatpush2.msra.mxu0 %v701
    %703 = vmatprep.subr.mxu0 0.0
    %v704 = vand.u32 %v91, 4294901760
    %705 = vmatpush2.msra.mxu0 %v704
    %706 = vmatprep.subr.mxu0 0.0
    %v707 = vand.u32 %v90, 4294901760
    %708 = vmatpush2.msra.mxu0 %v707
    %709 = vmatprep.subr.mxu0 0.0
    %v710 = vand.u32 %v89, 4294901760
    %711 = vmatpush2.msra.mxu0 %v710
    %712 = vmatprep.subr.mxu0 0.0
    %v713 = vand.u32 %v88, 4294901760
    %714 = vmatpush2.msra.mxu0 %v713
    %v715 = vand.u32 %v69, 4294901760
    %v716 = vsub.f32 %v69, %v715
    %v717 = vand.u32 %v716, 4294901760
    %718 = vmatprep.mubr.f32.mxu0 %v717
    %v719 = vand.u32 %v68, 4294901760
    %v720 = vsub.f32 %v68, %v719
    %v721 = vand.u32 %v720, 4294901760
    %722 = vmatmul.mubr.f32.gmra.mxu0 %v721
    %v723 = vpop.f32.mrf.mxu0
    %v724 = vadd.f32 %v616, %v723
    %v725 = vpop.f32.mrf.mxu0
    %726 = vdwg.mxu0
    %727 = vmatprep.subr.mxu0 0.0
    %v728 = vand.u32 %v87, 4294901760
    %v729 = vsub.f32 %v87, %v728
    %v730 = vand.u32 %v729, 4294901760
    %731 = vmatpush1.msra.mxu0 %v730
    %732 = vmatprep.subr.mxu0 0.0
    %v733 = vand.u32 %v86, 4294901760
    %v734 = vsub.f32 %v86, %v733
    %v735 = vand.u32 %v734, 4294901760
    %736 = vmatpush1.msra.mxu0 %v735
    %737 = vmatprep.subr.mxu0 0.0
    %v738 = vand.u32 %v85, 4294901760
    %v739 = vsub.f32 %v85, %v738
    %v740 = vand.u32 %v739, 4294901760
    %741 = vmatpush1.msra.mxu0 %v740
    %742 = vmatprep.subr.mxu0 0.0
    %v743 = vand.u32 %v84, 4294901760
    %v744 = vsub.f32 %v84, %v743
    %v745 = vand.u32 %v744, 4294901760
    %746 = vmatpush1.msra.mxu0 %v745
    %747 = vmatprep.subr.mxu0 0.0
    %v748 = vand.u32 %v83, 4294901760
    %v749 = vsub.f32 %v83, %v748
    %v750 = vand.u32 %v749, 4294901760
    %751 = vmatpush1.msra.mxu0 %v750
    %752 = vmatprep.subr.mxu0 0.0
    %v753 = vand.u32 %v82, 4294901760
    %v754 = vsub.f32 %v82, %v753
    %v755 = vand.u32 %v754, 4294901760
    %756 = vmatpush1.msra.mxu0 %v755
    %757 = vmatprep.subr.mxu0 0.0
    %v758 = vand.u32 %v81, 4294901760
    %v759 = vsub.f32 %v81, %v758
    %v760 = vand.u32 %v759, 4294901760
    %761 = vmatpush1.msra.mxu0 %v760
    %762 = vmatprep.subr.mxu0 0.0
    %v763 = vand.u32 %v80, 4294901760
    %v764 = vsub.f32 %v80, %v763
    %v765 = vand.u32 %v764, 4294901760
    %766 = vmatpush1.msra.mxu0 %v765
    %767 = vmatprep.subr.mxu0 0.0
    %v768 = vand.u32 %v79, 4294901760
    %v769 = vsub.f32 %v79, %v768
    %v770 = vand.u32 %v769, 4294901760
    %771 = vmatpush1.msra.mxu0 %v770
    %772 = vmatprep.subr.mxu0 0.0
    %v773 = vand.u32 %v78, 4294901760
    %v774 = vsub.f32 %v78, %v773
    %v775 = vand.u32 %v774, 4294901760
    %776 = vmatpush1.msra.mxu0 %v775
    %777 = vmatprep.subr.mxu0 0.0
    %v778 = vand.u32 %v77, 4294901760
    %v779 = vsub.f32 %v77, %v778
    %v780 = vand.u32 %v779, 4294901760
    %781 = vmatpush1.msra.mxu0 %v780
    %782 = vmatprep.subr.mxu0 0.0
    %v783 = vand.u32 %v76, 4294901760
    %v784 = vsub.f32 %v76, %v783
    %v785 = vand.u32 %v784, 4294901760
    %786 = vmatpush1.msra.mxu0 %v785
    %787 = vmatprep.subr.mxu0 0.0
    %v788 = vand.u32 %v75, 4294901760
    %v789 = vsub.f32 %v75, %v788
    %v790 = vand.u32 %v789, 4294901760
    %791 = vmatpush1.msra.mxu0 %v790
    %792 = vmatprep.subr.mxu0 0.0
    %v793 = vand.u32 %v74, 4294901760
    %v794 = vsub.f32 %v74, %v793
    %v795 = vand.u32 %v794, 4294901760
    %796 = vmatpush1.msra.mxu0 %v795
    %797 = vmatprep.subr.mxu0 0.0
    %v798 = vand.u32 %v73, 4294901760
    %v799 = vsub.f32 %v73, %v798
    %v800 = vand.u32 %v799, 4294901760
    %801 = vmatpush1.msra.mxu0 %v800
    %802 = vmatprep.subr.mxu0 0.0
    %v803 = vand.u32 %v72, 4294901760
    %v804 = vsub.f32 %v72, %v803
    %v805 = vand.u32 %v804, 4294901760
    %806 = vmatpush1.msra.mxu0 %v805
    %807 = vmatprep.subr.mxu0 0.0
    %v808 = vand.u32 %v103, 4294901760
    %v809 = vsub.f32 %v103, %v808
    %v810 = vand.u32 %v809, 4294901760
    %811 = vmatpush2.msra.mxu0 %v810
    %812 = vmatprep.subr.mxu0 0.0
    %v813 = vand.u32 %v102, 4294901760
    %v814 = vsub.f32 %v102, %v813
    %v815 = vand.u32 %v814, 4294901760
    %816 = vmatpush2.msra.mxu0 %v815
    %817 = vmatprep.subr.mxu0 0.0
    %v818 = vand.u32 %v101, 4294901760
    %v819 = vsub.f32 %v101, %v818
    %v820 = vand.u32 %v819, 4294901760
    %821 = vmatpush2.msra.mxu0 %v820
    %822 = vmatprep.subr.mxu0 0.0
    %v823 = vand.u32 %v100, 4294901760
    %v824 = vsub.f32 %v100, %v823
    %v825 = vand.u32 %v824, 4294901760
    %826 = vmatpush2.msra.mxu0 %v825
    %827 = vmatprep.subr.mxu0 0.0
    %v828 = vand.u32 %v99, 4294901760
    %v829 = vsub.f32 %v99, %v828
    %v830 = vand.u32 %v829, 4294901760
    %831 = vmatpush2.msra.mxu0 %v830
    %832 = vmatprep.subr.mxu0 0.0
    %v833 = vand.u32 %v98, 4294901760
    %v834 = vsub.f32 %v98, %v833
    %v835 = vand.u32 %v834, 4294901760
    %836 = vmatpush2.msra.mxu0 %v835
    %837 = vmatprep.subr.mxu0 0.0
    %v838 = vand.u32 %v97, 4294901760
    %v839 = vsub.f32 %v97, %v838
    %v840 = vand.u32 %v839, 4294901760
    %841 = vmatpush2.msra.mxu0 %v840
    %842 = vmatprep.subr.mxu0 0.0
    %v843 = vand.u32 %v96, 4294901760
    %v844 = vsub.f32 %v96, %v843
    %v845 = vand.u32 %v844, 4294901760
    %846 = vmatpush2.msra.mxu0 %v845
    %847 = vmatprep.subr.mxu0 0.0
    %v848 = vand.u32 %v95, 4294901760
    %v849 = vsub.f32 %v95, %v848
    %v850 = vand.u32 %v849, 4294901760
    %851 = vmatpush2.msra.mxu0 %v850
    %852 = vmatprep.subr.mxu0 0.0
    %v853 = vand.u32 %v94, 4294901760
    %v854 = vsub.f32 %v94, %v853
    %v855 = vand.u32 %v854, 4294901760
    %856 = vmatpush2.msra.mxu0 %v855
    %857 = vmatprep.subr.mxu0 0.0
    %v858 = vand.u32 %v93, 4294901760
    %v859 = vsub.f32 %v93, %v858
    %v860 = vand.u32 %v859, 4294901760
    %861 = vmatpush2.msra.mxu0 %v860
    %862 = vmatprep.subr.mxu0 0.0
    %v863 = vand.u32 %v92, 4294901760
    %v864 = vsub.f32 %v92, %v863
    %v865 = vand.u32 %v864, 4294901760
    %866 = vmatpush2.msra.mxu0 %v865
    %867 = vmatprep.subr.mxu0 0.0
    %v868 = vand.u32 %v91, 4294901760
    %v869 = vsub.f32 %v91, %v868
    %v870 = vand.u32 %v869, 4294901760
    %871 = vmatpush2.msra.mxu0 %v870
    %872 = vmatprep.subr.mxu0 0.0
    %v873 = vand.u32 %v90, 4294901760
    %v874 = vsub.f32 %v90, %v873
    %v875 = vand.u32 %v874, 4294901760
    %876 = vmatpush2.msra.mxu0 %v875
    %877 = vmatprep.subr.mxu0 0.0
    %v878 = vand.u32 %v89, 4294901760
    %v879 = vsub.f32 %v89, %v878
    %v880 = vand.u32 %v879, 4294901760
    %881 = vmatpush2.msra.mxu0 %v880
    %882 = vmatprep.subr.mxu0 0.0
    %v883 = vand.u32 %v88, 4294901760
    %v884 = vsub.f32 %v88, %v883
    %v885 = vand.u32 %v884, 4294901760
    %886 = vmatpush2.msra.mxu0 %v885
    %v887 = vand.u32 %v69, 4294901760
    %888 = vmatprep.mubr.f32.mxu0 %v887
    %v889 = vand.u32 %v68, 4294901760
    %890 = vmatmul.mubr.f32.gmra.mxu0 %v889
    %v891 = vpop.f32.mrf.mxu0
    %v892 = vadd.f32 %v724, %v891
    %v893 = vpop.f32.mrf.mxu0
    %894 = vdwg.mxu0
    %895 = vmatprep.subr.mxu0 0.0
    %v896 = vand.u32 %v87, 4294901760
    %897 = vmatpush1.msra.mxu0 %v896
    %898 = vmatprep.subr.mxu0 0.0
    %v899 = vand.u32 %v86, 4294901760
    %900 = vmatpush1.msra.mxu0 %v899
    %901 = vmatprep.subr.mxu0 0.0
    %v902 = vand.u32 %v85, 4294901760
    %903 = vmatpush1.msra.mxu0 %v902
    %904 = vmatprep.subr.mxu0 0.0
    %v905 = vand.u32 %v84, 4294901760
    %906 = vmatpush1.msra.mxu0 %v905
    %907 = vmatprep.subr.mxu0 0.0
    %v908 = vand.u32 %v83, 4294901760
    %909 = vmatpush1.msra.mxu0 %v908
    %910 = vmatprep.subr.mxu0 0.0
    %v911 = vand.u32 %v82, 4294901760
    %912 = vmatpush1.msra.mxu0 %v911
    %913 = vmatprep.subr.mxu0 0.0
    %v914 = vand.u32 %v81, 4294901760
    %915 = vmatpush1.msra.mxu0 %v914
    %916 = vmatprep.subr.mxu0 0.0
    %v917 = vand.u32 %v80, 4294901760
    %918 = vmatpush1.msra.mxu0 %v917
    %919 = vmatprep.subr.mxu0 0.0
    %v920 = vand.u32 %v79, 4294901760
    %921 = vmatpush1.msra.mxu0 %v920
    %922 = vmatprep.subr.mxu0 0.0
    %v923 = vand.u32 %v78, 4294901760
    %924 = vmatpush1.msra.mxu0 %v923
    %925 = vmatprep.subr.mxu0 0.0
    %v926 = vand.u32 %v77, 4294901760
    %927 = vmatpush1.msra.mxu0 %v926
    %928 = vmatprep.subr.mxu0 0.0
    %v929 = vand.u32 %v76, 4294901760
    %930 = vmatpush1.msra.mxu0 %v929
    %931 = vmatprep.subr.mxu0 0.0
    %v932 = vand.u32 %v75, 4294901760
    %933 = vmatpush1.msra.mxu0 %v932
    %934 = vmatprep.subr.mxu0 0.0
    %v935 = vand.u32 %v74, 4294901760
    %936 = vmatpush1.msra.mxu0 %v935
    %937 = vmatprep.subr.mxu0 0.0
    %v938 = vand.u32 %v73, 4294901760
    %939 = vmatpush1.msra.mxu0 %v938
    %940 = vmatprep.subr.mxu0 0.0
    %v941 = vand.u32 %v72, 4294901760
    %942 = vmatpush1.msra.mxu0 %v941
    %943 = vmatprep.subr.mxu0 0.0
    %v944 = vand.u32 %v103, 4294901760
    %945 = vmatpush2.msra.mxu0 %v944
    %946 = vmatprep.subr.mxu0 0.0
    %v947 = vand.u32 %v102, 4294901760
    %948 = vmatpush2.msra.mxu0 %v947
    %949 = vmatprep.subr.mxu0 0.0
    %v950 = vand.u32 %v101, 4294901760
    %951 = vmatpush2.msra.mxu0 %v950
    %952 = vmatprep.subr.mxu0 0.0
    %v953 = vand.u32 %v100, 4294901760
    %954 = vmatpush2.msra.mxu0 %v953
    %955 = vmatprep.subr.mxu0 0.0
    %v956 = vand.u32 %v99, 4294901760
    %957 = vmatpush2.msra.mxu0 %v956
    %958 = vmatprep.subr.mxu0 0.0
    %v959 = vand.u32 %v98, 4294901760
    %960 = vmatpush2.msra.mxu0 %v959
    %961 = vmatprep.subr.mxu0 0.0
    %v962 = vand.u32 %v97, 4294901760
    %963 = vmatpush2.msra.mxu0 %v962
    %964 = vmatprep.subr.mxu0 0.0
    %v965 = vand.u32 %v96, 4294901760
    %966 = vmatpush2.msra.mxu0 %v965
    %967 = vmatprep.subr.mxu0 0.0
    %v968 = vand.u32 %v95, 4294901760
    %969 = vmatpush2.msra.mxu0 %v968
    %970 = vmatprep.subr.mxu0 0.0
    %v971 = vand.u32 %v94, 4294901760
    %972 = vmatpush2.msra.mxu0 %v971
    %973 = vmatprep.subr.mxu0 0.0
    %v974 = vand.u32 %v93, 4294901760
    %975 = vmatpush2.msra.mxu0 %v974
    %976 = vmatprep.subr.mxu0 0.0
    %v977 = vand.u32 %v92, 4294901760
    %978 = vmatpush2.msra.mxu0 %v977
    %979 = vmatprep.subr.mxu0 0.0
    %v980 = vand.u32 %v91, 4294901760
    %981 = vmatpush2.msra.mxu0 %v980
    %982 = vmatprep.subr.mxu0 0.0
    %v983 = vand.u32 %v90, 4294901760
    %984 = vmatpush2.msra.mxu0 %v983
    %985 = vmatprep.subr.mxu0 0.0
    %v986 = vand.u32 %v89, 4294901760
    %987 = vmatpush2.msra.mxu0 %v986
    %988 = vmatprep.subr.mxu0 0.0
    %v989 = vand.u32 %v88, 4294901760
    %990 = vmatpush2.msra.mxu0 %v989
    %v991 = vand.u32 %v69, 4294901760
    %992 = vmatprep.mubr.f32.mxu0 %v991
    %v993 = vand.u32 %v68, 4294901760
    %994 = vmatmul.mubr.f32.gmra.mxu0 %v993
    %v995 = vpop.f32.mrf.mxu0
    %v996 = vadd.f32 %v892, %v995
    %v997 = vpop.f32.mrf.mxu0
    %998 = vdwg.mxu0
    %999 = vmatprep.subr.mxu0 0.0
    %v1000 = vand.u32 %v119, 4294901760
    %1001 = vmatpush1.msra.mxu0 %v1000
    %1002 = vmatprep.subr.mxu0 0.0
    %v1003 = vand.u32 %v118, 4294901760
    %1004 = vmatpush1.msra.mxu0 %v1003
    %1005 = vmatprep.subr.mxu0 0.0
    %v1006 = vand.u32 %v117, 4294901760
    %1007 = vmatpush1.msra.mxu0 %v1006
    %1008 = vmatprep.subr.mxu0 0.0
    %v1009 = vand.u32 %v116, 4294901760
    %1010 = vmatpush1.msra.mxu0 %v1009
    %1011 = vmatprep.subr.mxu0 0.0
    %v1012 = vand.u32 %v115, 4294901760
    %1013 = vmatpush1.msra.mxu0 %v1012
    %1014 = vmatprep.subr.mxu0 0.0
    %v1015 = vand.u32 %v114, 4294901760
    %1016 = vmatpush1.msra.mxu0 %v1015
    %1017 = vmatprep.subr.mxu0 0.0
    %v1018 = vand.u32 %v113, 4294901760
    %1019 = vmatpush1.msra.mxu0 %v1018
    %1020 = vmatprep.subr.mxu0 0.0
    %v1021 = vand.u32 %v112, 4294901760
    %1022 = vmatpush1.msra.mxu0 %v1021
    %1023 = vmatprep.subr.mxu0 0.0
    %v1024 = vand.u32 %v111, 4294901760
    %1025 = vmatpush1.msra.mxu0 %v1024
    %1026 = vmatprep.subr.mxu0 0.0
    %v1027 = vand.u32 %v110, 4294901760
    %1028 = vmatpush1.msra.mxu0 %v1027
    %1029 = vmatprep.subr.mxu0 0.0
    %v1030 = vand.u32 %v109, 4294901760
    %1031 = vmatpush1.msra.mxu0 %v1030
    %1032 = vmatprep.subr.mxu0 0.0
    %v1033 = vand.u32 %v108, 4294901760
    %1034 = vmatpush1.msra.mxu0 %v1033
    %1035 = vmatprep.subr.mxu0 0.0
    %v1036 = vand.u32 %v107, 4294901760
    %1037 = vmatpush1.msra.mxu0 %v1036
    %1038 = vmatprep.subr.mxu0 0.0
    %v1039 = vand.u32 %v106, 4294901760
    %1040 = vmatpush1.msra.mxu0 %v1039
    %1041 = vmatprep.subr.mxu0 0.0
    %v1042 = vand.u32 %v105, 4294901760
    %1043 = vmatpush1.msra.mxu0 %v1042
    %1044 = vmatprep.subr.mxu0 0.0
    %v1045 = vand.u32 %v104, 4294901760
    %1046 = vmatpush1.msra.mxu0 %v1045
    %1047 = vmatprep.subr.mxu0 0.0
    %v1048 = vand.u32 %v135, 4294901760
    %1049 = vmatpush2.msra.mxu0 %v1048
    %1050 = vmatprep.subr.mxu0 0.0
    %v1051 = vand.u32 %v134, 4294901760
    %1052 = vmatpush2.msra.mxu0 %v1051
    %1053 = vmatprep.subr.mxu0 0.0
    %v1054 = vand.u32 %v133, 4294901760
    %1055 = vmatpush2.msra.mxu0 %v1054
    %1056 = vmatprep.subr.mxu0 0.0
    %v1057 = vand.u32 %v132, 4294901760
    %1058 = vmatpush2.msra.mxu0 %v1057
    %1059 = vmatprep.subr.mxu0 0.0
    %v1060 = vand.u32 %v131, 4294901760
    %1061 = vmatpush2.msra.mxu0 %v1060
    %1062 = vmatprep.subr.mxu0 0.0
    %v1063 = vand.u32 %v130, 4294901760
    %1064 = vmatpush2.msra.mxu0 %v1063
    %1065 = vmatprep.subr.mxu0 0.0
    %v1066 = vand.u32 %v129, 4294901760
    %1067 = vmatpush2.msra.mxu0 %v1066
    %1068 = vmatprep.subr.mxu0 0.0
    %v1069 = vand.u32 %v128, 4294901760
    %1070 = vmatpush2.msra.mxu0 %v1069
    %1071 = vmatprep.subr.mxu0 0.0
    %v1072 = vand.u32 %v127, 4294901760
    %1073 = vmatpush2.msra.mxu0 %v1072
    %1074 = vmatprep.subr.mxu0 0.0
    %v1075 = vand.u32 %v126, 4294901760
    %1076 = vmatpush2.msra.mxu0 %v1075
    %1077 = vmatprep.subr.mxu0 0.0
    %v1078 = vand.u32 %v125, 4294901760
    %1079 = vmatpush2.msra.mxu0 %v1078
    %1080 = vmatprep.subr.mxu0 0.0
    %v1081 = vand.u32 %v124, 4294901760
    %1082 = vmatpush2.msra.mxu0 %v1081
    %1083 = vmatprep.subr.mxu0 0.0
    %v1084 = vand.u32 %v123, 4294901760
    %1085 = vmatpush2.msra.mxu0 %v1084
    %1086 = vmatprep.subr.mxu0 0.0
    %v1087 = vand.u32 %v122, 4294901760
    %1088 = vmatpush2.msra.mxu0 %v1087
    %1089 = vmatprep.subr.mxu0 0.0
    %v1090 = vand.u32 %v121, 4294901760
    %1091 = vmatpush2.msra.mxu0 %v1090
    %1092 = vmatprep.subr.mxu0 0.0
    %v1093 = vand.u32 %v120, 4294901760
    %1094 = vmatpush2.msra.mxu0 %v1093
    %v1095 = vand.u32 %v71, 4294901760
    %v1096 = vsub.f32 %v71, %v1095
    %v1097 = vand.u32 %v1096, 4294901760
    %v1098 = vsub.f32 %v1096, %v1097
    %v1099 = vand.u32 %v1098, 4294901760
    %1100 = vmatprep.mubr.f32.mxu0 %v1099
    %v1101 = vand.u32 %v70, 4294901760
    %v1102 = vsub.f32 %v70, %v1101
    %v1103 = vand.u32 %v1102, 4294901760
    %v1104 = vsub.f32 %v1102, %v1103
    %v1105 = vand.u32 %v1104, 4294901760
    %1106 = vmatmul.mubr.f32.gmra.mxu0 %v1105
    %v1107 = vpop.f32.mrf.mxu0
    %v1108 = vadd.f32 %v996, %v1107
    %v1109 = vpop.f32.mrf.mxu0
    %1110 = vdwg.mxu0
    %1111 = vmatprep.subr.mxu0 0.0
    %v1112 = vand.u32 %v119, 4294901760
    %v1113 = vsub.f32 %v119, %v1112
    %v1114 = vand.u32 %v1113, 4294901760
    %v1115 = vsub.f32 %v1113, %v1114
    %v1116 = vand.u32 %v1115, 4294901760
    %1117 = vmatpush1.msra.mxu0 %v1116
    %1118 = vmatprep.subr.mxu0 0.0
    %v1119 = vand.u32 %v118, 4294901760
    %v1120 = vsub.f32 %v118, %v1119
    %v1121 = vand.u32 %v1120, 4294901760
    %v1122 = vsub.f32 %v1120, %v1121
    %v1123 = vand.u32 %v1122, 4294901760
    %1124 = vmatpush1.msra.mxu0 %v1123
    %1125 = vmatprep.subr.mxu0 0.0
    %v1126 = vand.u32 %v117, 4294901760
    %v1127 = vsub.f32 %v117, %v1126
    %v1128 = vand.u32 %v1127, 4294901760
    %v1129 = vsub.f32 %v1127, %v1128
    %v1130 = vand.u32 %v1129, 4294901760
    %1131 = vmatpush1.msra.mxu0 %v1130
    %1132 = vmatprep.subr.mxu0 0.0
    %v1133 = vand.u32 %v116, 4294901760
    %v1134 = vsub.f32 %v116, %v1133
    %v1135 = vand.u32 %v1134, 4294901760
    %v1136 = vsub.f32 %v1134, %v1135
    %v1137 = vand.u32 %v1136, 4294901760
    %1138 = vmatpush1.msra.mxu0 %v1137
    %1139 = vmatprep.subr.mxu0 0.0
    %v1140 = vand.u32 %v115, 4294901760
    %v1141 = vsub.f32 %v115, %v1140
    %v1142 = vand.u32 %v1141, 4294901760
    %v1143 = vsub.f32 %v1141, %v1142
    %v1144 = vand.u32 %v1143, 4294901760
    %1145 = vmatpush1.msra.mxu0 %v1144
    %1146 = vmatprep.subr.mxu0 0.0
    %v1147 = vand.u32 %v114, 4294901760
    %v1148 = vsub.f32 %v114, %v1147
    %v1149 = vand.u32 %v1148, 4294901760
    %v1150 = vsub.f32 %v1148, %v1149
    %v1151 = vand.u32 %v1150, 4294901760
    %1152 = vmatpush1.msra.mxu0 %v1151
    %1153 = vmatprep.subr.mxu0 0.0
    %v1154 = vand.u32 %v113, 4294901760
    %v1155 = vsub.f32 %v113, %v1154
    %v1156 = vand.u32 %v1155, 4294901760
    %v1157 = vsub.f32 %v1155, %v1156
    %v1158 = vand.u32 %v1157, 4294901760
    %1159 = vmatpush1.msra.mxu0 %v1158
    %1160 = vmatprep.subr.mxu0 0.0
    %v1161 = vand.u32 %v112, 4294901760
    %v1162 = vsub.f32 %v112, %v1161
    %v1163 = vand.u32 %v1162, 4294901760
    %v1164 = vsub.f32 %v1162, %v1163
    %v1165 = vand.u32 %v1164, 4294901760
    %1166 = vmatpush1.msra.mxu0 %v1165
    %1167 = vmatprep.subr.mxu0 0.0
    %v1168 = vand.u32 %v111, 4294901760
    %v1169 = vsub.f32 %v111, %v1168
    %v1170 = vand.u32 %v1169, 4294901760
    %v1171 = vsub.f32 %v1169, %v1170
    %v1172 = vand.u32 %v1171, 4294901760
    %1173 = vmatpush1.msra.mxu0 %v1172
    %1174 = vmatprep.subr.mxu0 0.0
    %v1175 = vand.u32 %v110, 4294901760
    %v1176 = vsub.f32 %v110, %v1175
    %v1177 = vand.u32 %v1176, 4294901760
    %v1178 = vsub.f32 %v1176, %v1177
    %v1179 = vand.u32 %v1178, 4294901760
    %1180 = vmatpush1.msra.mxu0 %v1179
    %1181 = vmatprep.subr.mxu0 0.0
    %v1182 = vand.u32 %v109, 4294901760
    %v1183 = vsub.f32 %v109, %v1182
    %v1184 = vand.u32 %v1183, 4294901760
    %v1185 = vsub.f32 %v1183, %v1184
    %v1186 = vand.u32 %v1185, 4294901760
    %1187 = vmatpush1.msra.mxu0 %v1186
    %1188 = vmatprep.subr.mxu0 0.0
    %v1189 = vand.u32 %v108, 4294901760
    %v1190 = vsub.f32 %v108, %v1189
    %v1191 = vand.u32 %v1190, 4294901760
    %v1192 = vsub.f32 %v1190, %v1191
    %v1193 = vand.u32 %v1192, 4294901760
    %1194 = vmatpush1.msra.mxu0 %v1193
    %1195 = vmatprep.subr.mxu0 0.0
    %v1196 = vand.u32 %v107, 4294901760
    %v1197 = vsub.f32 %v107, %v1196
    %v1198 = vand.u32 %v1197, 4294901760
    %v1199 = vsub.f32 %v1197, %v1198
    %v1200 = vand.u32 %v1199, 4294901760
    %1201 = vmatpush1.msra.mxu0 %v1200
    %1202 = vmatprep.subr.mxu0 0.0
    %v1203 = vand.u32 %v106, 4294901760
    %v1204 = vsub.f32 %v106, %v1203
    %v1205 = vand.u32 %v1204, 4294901760
    %v1206 = vsub.f32 %v1204, %v1205
    %v1207 = vand.u32 %v1206, 4294901760
    %1208 = vmatpush1.msra.mxu0 %v1207
    %1209 = vmatprep.subr.mxu0 0.0
    %v1210 = vand.u32 %v105, 4294901760
    %v1211 = vsub.f32 %v105, %v1210
    %v1212 = vand.u32 %v1211, 4294901760
    %v1213 = vsub.f32 %v1211, %v1212
    %v1214 = vand.u32 %v1213, 4294901760
    %1215 = vmatpush1.msra.mxu0 %v1214
    %1216 = vmatprep.subr.mxu0 0.0
    %v1217 = vand.u32 %v104, 4294901760
    %v1218 = vsub.f32 %v104, %v1217
    %v1219 = vand.u32 %v1218, 4294901760
    %v1220 = vsub.f32 %v1218, %v1219
    %v1221 = vand.u32 %v1220, 4294901760
    %1222 = vmatpush1.msra.mxu0 %v1221
    %1223 = vmatprep.subr.mxu0 0.0
    %v1224 = vand.u32 %v135, 4294901760
    %v1225 = vsub.f32 %v135, %v1224
    %v1226 = vand.u32 %v1225, 4294901760
    %v1227 = vsub.f32 %v1225, %v1226
    %v1228 = vand.u32 %v1227, 4294901760
    %1229 = vmatpush2.msra.mxu0 %v1228
    %1230 = vmatprep.subr.mxu0 0.0
    %v1231 = vand.u32 %v134, 4294901760
    %v1232 = vsub.f32 %v134, %v1231
    %v1233 = vand.u32 %v1232, 4294901760
    %v1234 = vsub.f32 %v1232, %v1233
    %v1235 = vand.u32 %v1234, 4294901760
    %1236 = vmatpush2.msra.mxu0 %v1235
    %1237 = vmatprep.subr.mxu0 0.0
    %v1238 = vand.u32 %v133, 4294901760
    %v1239 = vsub.f32 %v133, %v1238
    %v1240 = vand.u32 %v1239, 4294901760
    %v1241 = vsub.f32 %v1239, %v1240
    %v1242 = vand.u32 %v1241, 4294901760
    %1243 = vmatpush2.msra.mxu0 %v1242
    %1244 = vmatprep.subr.mxu0 0.0
    %v1245 = vand.u32 %v132, 4294901760
    %v1246 = vsub.f32 %v132, %v1245
    %v1247 = vand.u32 %v1246, 4294901760
    %v1248 = vsub.f32 %v1246, %v1247
    %v1249 = vand.u32 %v1248, 4294901760
    %1250 = vmatpush2.msra.mxu0 %v1249
    %1251 = vmatprep.subr.mxu0 0.0
    %v1252 = vand.u32 %v131, 4294901760
    %v1253 = vsub.f32 %v131, %v1252
    %v1254 = vand.u32 %v1253, 4294901760
    %v1255 = vsub.f32 %v1253, %v1254
    %v1256 = vand.u32 %v1255, 4294901760
    %1257 = vmatpush2.msra.mxu0 %v1256
    %1258 = vmatprep.subr.mxu0 0.0
    %v1259 = vand.u32 %v130, 4294901760
    %v1260 = vsub.f32 %v130, %v1259
    %v1261 = vand.u32 %v1260, 4294901760
    %v1262 = vsub.f32 %v1260, %v1261
    %v1263 = vand.u32 %v1262, 4294901760
    %1264 = vmatpush2.msra.mxu0 %v1263
    %1265 = vmatprep.subr.mxu0 0.0
    %v1266 = vand.u32 %v129, 4294901760
    %v1267 = vsub.f32 %v129, %v1266
    %v1268 = vand.u32 %v1267, 4294901760
    %v1269 = vsub.f32 %v1267, %v1268
    %v1270 = vand.u32 %v1269, 4294901760
    %1271 = vmatpush2.msra.mxu0 %v1270
    %1272 = vmatprep.subr.mxu0 0.0
    %v1273 = vand.u32 %v128, 4294901760
    %v1274 = vsub.f32 %v128, %v1273
    %v1275 = vand.u32 %v1274, 4294901760
    %v1276 = vsub.f32 %v1274, %v1275
    %v1277 = vand.u32 %v1276, 4294901760
    %1278 = vmatpush2.msra.mxu0 %v1277
    %1279 = vmatprep.subr.mxu0 0.0
    %v1280 = vand.u32 %v127, 4294901760
    %v1281 = vsub.f32 %v127, %v1280
    %v1282 = vand.u32 %v1281, 4294901760
    %v1283 = vsub.f32 %v1281, %v1282
    %v1284 = vand.u32 %v1283, 4294901760
    %1285 = vmatpush2.msra.mxu0 %v1284
    %1286 = vmatprep.subr.mxu0 0.0
    %v1287 = vand.u32 %v126, 4294901760
    %v1288 = vsub.f32 %v126, %v1287
    %v1289 = vand.u32 %v1288, 4294901760
    %v1290 = vsub.f32 %v1288, %v1289
    %v1291 = vand.u32 %v1290, 4294901760
    %1292 = vmatpush2.msra.mxu0 %v1291
    %1293 = vmatprep.subr.mxu0 0.0
    %v1294 = vand.u32 %v125, 4294901760
    %v1295 = vsub.f32 %v125, %v1294
    %v1296 = vand.u32 %v1295, 4294901760
    %v1297 = vsub.f32 %v1295, %v1296
    %v1298 = vand.u32 %v1297, 4294901760
    %1299 = vmatpush2.msra.mxu0 %v1298
    %1300 = vmatprep.subr.mxu0 0.0
    %v1301 = vand.u32 %v124, 4294901760
    %v1302 = vsub.f32 %v124, %v1301
    %v1303 = vand.u32 %v1302, 4294901760
    %v1304 = vsub.f32 %v1302, %v1303
    %v1305 = vand.u32 %v1304, 4294901760
    %1306 = vmatpush2.msra.mxu0 %v1305
    %1307 = vmatprep.subr.mxu0 0.0
    %v1308 = vand.u32 %v123, 4294901760
    %v1309 = vsub.f32 %v123, %v1308
    %v1310 = vand.u32 %v1309, 4294901760
    %v1311 = vsub.f32 %v1309, %v1310
    %v1312 = vand.u32 %v1311, 4294901760
    %1313 = vmatpush2.msra.mxu0 %v1312
    %1314 = vmatprep.subr.mxu0 0.0
    %v1315 = vand.u32 %v122, 4294901760
    %v1316 = vsub.f32 %v122, %v1315
    %v1317 = vand.u32 %v1316, 4294901760
    %v1318 = vsub.f32 %v1316, %v1317
    %v1319 = vand.u32 %v1318, 4294901760
    %1320 = vmatpush2.msra.mxu0 %v1319
    %1321 = vmatprep.subr.mxu0 0.0
    %v1322 = vand.u32 %v121, 4294901760
    %v1323 = vsub.f32 %v121, %v1322
    %v1324 = vand.u32 %v1323, 4294901760
    %v1325 = vsub.f32 %v1323, %v1324
    %v1326 = vand.u32 %v1325, 4294901760
    %1327 = vmatpush2.msra.mxu0 %v1326
    %1328 = vmatprep.subr.mxu0 0.0
    %v1329 = vand.u32 %v120, 4294901760
    %v1330 = vsub.f32 %v120, %v1329
    %v1331 = vand.u32 %v1330, 4294901760
    %v1332 = vsub.f32 %v1330, %v1331
    %v1333 = vand.u32 %v1332, 4294901760
    %1334 = vmatpush2.msra.mxu0 %v1333
    %v1335 = vand.u32 %v71, 4294901760
    %1336 = vmatprep.mubr.f32.mxu0 %v1335
    %v1337 = vand.u32 %v70, 4294901760
    %1338 = vmatmul.mubr.f32.gmra.mxu0 %v1337
    %v1339 = vpop.f32.mrf.mxu0
    %v1340 = vadd.f32 %v1108, %v1339
    %v1341 = vpop.f32.mrf.mxu0
    %1342 = vdwg.mxu0
    %1343 = vmatprep.subr.mxu0 0.0
    %v1344 = vand.u32 %v119, 4294901760
    %v1345 = vsub.f32 %v119, %v1344
    %1346 = vmatpush1.msra.mxu0 %v1345
    %1347 = vmatprep.subr.mxu0 0.0
    %v1348 = vand.u32 %v118, 4294901760
    %v1349 = vsub.f32 %v118, %v1348
    %1350 = vmatpush1.msra.mxu0 %v1349
    %1351 = vmatprep.subr.mxu0 0.0
    %v1352 = vand.u32 %v117, 4294901760
    %v1353 = vsub.f32 %v117, %v1352
    %1354 = vmatpush1.msra.mxu0 %v1353
    %1355 = vmatprep.subr.mxu0 0.0
    %v1356 = vand.u32 %v116, 4294901760
    %v1357 = vsub.f32 %v116, %v1356
    %1358 = vmatpush1.msra.mxu0 %v1357
    %1359 = vmatprep.subr.mxu0 0.0
    %v1360 = vand.u32 %v115, 4294901760
    %v1361 = vsub.f32 %v115, %v1360
    %1362 = vmatpush1.msra.mxu0 %v1361
    %1363 = vmatprep.subr.mxu0 0.0
    %v1364 = vand.u32 %v114, 4294901760
    %v1365 = vsub.f32 %v114, %v1364
    %1366 = vmatpush1.msra.mxu0 %v1365
    %1367 = vmatprep.subr.mxu0 0.0
    %v1368 = vand.u32 %v113, 4294901760
    %v1369 = vsub.f32 %v113, %v1368
    %1370 = vmatpush1.msra.mxu0 %v1369
    %1371 = vmatprep.subr.mxu0 0.0
    %v1372 = vand.u32 %v112, 4294901760
    %v1373 = vsub.f32 %v112, %v1372
    %1374 = vmatpush1.msra.mxu0 %v1373
    %1375 = vmatprep.subr.mxu0 0.0
    %v1376 = vand.u32 %v111, 4294901760
    %v1377 = vsub.f32 %v111, %v1376
    %1378 = vmatpush1.msra.mxu0 %v1377
    %1379 = vmatprep.subr.mxu0 0.0
    %v1380 = vand.u32 %v110, 4294901760
    %v1381 = vsub.f32 %v110, %v1380
    %1382 = vmatpush1.msra.mxu0 %v1381
    %1383 = vmatprep.subr.mxu0 0.0
    %v1384 = vand.u32 %v109, 4294901760
    %v1385 = vsub.f32 %v109, %v1384
    %1386 = vmatpush1.msra.mxu0 %v1385
    %1387 = vmatprep.subr.mxu0 0.0
    %v1388 = vand.u32 %v108, 4294901760
    %v1389 = vsub.f32 %v108, %v1388
    %1390 = vmatpush1.msra.mxu0 %v1389
    %1391 = vmatprep.subr.mxu0 0.0
    %v1392 = vand.u32 %v107, 4294901760
    %v1393 = vsub.f32 %v107, %v1392
    %1394 = vmatpush1.msra.mxu0 %v1393
    %1395 = vmatprep.subr.mxu0 0.0
    %v1396 = vand.u32 %v106, 4294901760
    %v1397 = vsub.f32 %v106, %v1396
    %1398 = vmatpush1.msra.mxu0 %v1397
    %1399 = vmatprep.subr.mxu0 0.0
    %v1400 = vand.u32 %v105, 4294901760
    %v1401 = vsub.f32 %v105, %v1400
    %1402 = vmatpush1.msra.mxu0 %v1401
    %1403 = vmatprep.subr.mxu0 0.0
    %v1404 = vand.u32 %v104, 4294901760
    %v1405 = vsub.f32 %v104, %v1404
    %1406 = vmatpush1.msra.mxu0 %v1405
    %1407 = vmatprep.subr.mxu0 0.0
    %v1408 = vand.u32 %v135, 4294901760
    %v1409 = vsub.f32 %v135, %v1408
    %1410 = vmatpush2.msra.mxu0 %v1409
    %1411 = vmatprep.subr.mxu0 0.0
    %v1412 = vand.u32 %v134, 4294901760
    %v1413 = vsub.f32 %v134, %v1412
    %1414 = vmatpush2.msra.mxu0 %v1413
    %1415 = vmatprep.subr.mxu0 0.0
    %v1416 = vand.u32 %v133, 4294901760
    %v1417 = vsub.f32 %v133, %v1416
    %1418 = vmatpush2.msra.mxu0 %v1417
    %1419 = vmatprep.subr.mxu0 0.0
    %v1420 = vand.u32 %v132, 4294901760
    %v1421 = vsub.f32 %v132, %v1420
    %1422 = vmatpush2.msra.mxu0 %v1421
    %1423 = vmatprep.subr.mxu0 0.0
    %v1424 = vand.u32 %v131, 4294901760
    %v1425 = vsub.f32 %v131, %v1424
    %1426 = vmatpush2.msra.mxu0 %v1425
    %1427 = vmatprep.subr.mxu0 0.0
    %v1428 = vand.u32 %v130, 4294901760
    %v1429 = vsub.f32 %v130, %v1428
    %1430 = vmatpush2.msra.mxu0 %v1429
    %1431 = vmatprep.subr.mxu0 0.0
    %v1432 = vand.u32 %v129, 4294901760
    %v1433 = vsub.f32 %v129, %v1432
    %1434 = vmatpush2.msra.mxu0 %v1433
    %1435 = vmatprep.subr.mxu0 0.0
    %v1436 = vand.u32 %v128, 4294901760
    %v1437 = vsub.f32 %v128, %v1436
    %1438 = vmatpush2.msra.mxu0 %v1437
    %1439 = vmatprep.subr.mxu0 0.0
    %v1440 = vand.u32 %v127, 4294901760
    %v1441 = vsub.f32 %v127, %v1440
    %1442 = vmatpush2.msra.mxu0 %v1441
    %1443 = vmatprep.subr.mxu0 0.0
    %v1444 = vand.u32 %v126, 4294901760
    %v1445 = vsub.f32 %v126, %v1444
    %1446 = vmatpush2.msra.mxu0 %v1445
    %1447 = vmatprep.subr.mxu0 0.0
    %v1448 = vand.u32 %v125, 4294901760
    %v1449 = vsub.f32 %v125, %v1448
    %1450 = vmatpush2.msra.mxu0 %v1449
    %1451 = vmatprep.subr.mxu0 0.0
    %v1452 = vand.u32 %v124, 4294901760
    %v1453 = vsub.f32 %v124, %v1452
    %1454 = vmatpush2.msra.mxu0 %v1453
    %1455 = vmatprep.subr.mxu0 0.0
    %v1456 = vand.u32 %v123, 4294901760
    %v1457 = vsub.f32 %v123, %v1456
    %1458 = vmatpush2.msra.mxu0 %v1457
    %1459 = vmatprep.subr.mxu0 0.0
    %v1460 = vand.u32 %v122, 4294901760
    %v1461 = vsub.f32 %v122, %v1460
    %1462 = vmatpush2.msra.mxu0 %v1461
    %1463 = vmatprep.subr.mxu0 0.0
    %v1464 = vand.u32 %v121, 4294901760
    %v1465 = vsub.f32 %v121, %v1464
    %1466 = vmatpush2.msra.mxu0 %v1465
    %1467 = vmatprep.subr.mxu0 0.0
    %v1468 = vand.u32 %v120, 4294901760
    %v1469 = vsub.f32 %v120, %v1468
    %1470 = vmatpush2.msra.mxu0 %v1469
    %v1471 = vand.u32 %v71, 4294901760
    %v1472 = vsub.f32 %v71, %v1471
    %1473 = vmatprep.mubr.f32.mxu0 %v1472
    %v1474 = vand.u32 %v70, 4294901760
    %v1475 = vsub.f32 %v70, %v1474
    %1476 = vmatmul.mubr.f32.gmra.mxu0 %v1475
    %v1477 = vpop.f32.mrf.mxu0
    %v1478 = vadd.f32 %v1340, %v1477
    %v1479 = vpop.f32.mrf.mxu0
    %1480 = vdwg.mxu0
    %1481 = vmatprep.subr.mxu0 0.0
    %v1482 = vand.u32 %v119, 4294901760
    %1483 = vmatpush1.msra.mxu0 %v1482
    %1484 = vmatprep.subr.mxu0 0.0
    %v1485 = vand.u32 %v118, 4294901760
    %1486 = vmatpush1.msra.mxu0 %v1485
    %1487 = vmatprep.subr.mxu0 0.0
    %v1488 = vand.u32 %v117, 4294901760
    %1489 = vmatpush1.msra.mxu0 %v1488
    %1490 = vmatprep.subr.mxu0 0.0
    %v1491 = vand.u32 %v116, 4294901760
    %1492 = vmatpush1.msra.mxu0 %v1491
    %1493 = vmatprep.subr.mxu0 0.0
    %v1494 = vand.u32 %v115, 4294901760
    %1495 = vmatpush1.msra.mxu0 %v1494
    %1496 = vmatprep.subr.mxu0 0.0
    %v1497 = vand.u32 %v114, 4294901760
    %1498 = vmatpush1.msra.mxu0 %v1497
    %1499 = vmatprep.subr.mxu0 0.0
    %v1500 = vand.u32 %v113, 4294901760
    %1501 = vmatpush1.msra.mxu0 %v1500
    %1502 = vmatprep.subr.mxu0 0.0
    %v1503 = vand.u32 %v112, 4294901760
    %1504 = vmatpush1.msra.mxu0 %v1503
    %1505 = vmatprep.subr.mxu0 0.0
    %v1506 = vand.u32 %v111, 4294901760
    %1507 = vmatpush1.msra.mxu0 %v1506
    %1508 = vmatprep.subr.mxu0 0.0
    %v1509 = vand.u32 %v110, 4294901760
    %1510 = vmatpush1.msra.mxu0 %v1509
    %1511 = vmatprep.subr.mxu0 0.0
    %v1512 = vand.u32 %v109, 4294901760
    %1513 = vmatpush1.msra.mxu0 %v1512
    %1514 = vmatprep.subr.mxu0 0.0
    %v1515 = vand.u32 %v108, 4294901760
    %1516 = vmatpush1.msra.mxu0 %v1515
    %1517 = vmatprep.subr.mxu0 0.0
    %v1518 = vand.u32 %v107, 4294901760
    %1519 = vmatpush1.msra.mxu0 %v1518
    %1520 = vmatprep.subr.mxu0 0.0
    %v1521 = vand.u32 %v106, 4294901760
    %1522 = vmatpush1.msra.mxu0 %v1521
    %1523 = vmatprep.subr.mxu0 0.0
    %v1524 = vand.u32 %v105, 4294901760
    %1525 = vmatpush1.msra.mxu0 %v1524
    %1526 = vmatprep.subr.mxu0 0.0
    %v1527 = vand.u32 %v104, 4294901760
    %1528 = vmatpush1.msra.mxu0 %v1527
    %1529 = vmatprep.subr.mxu0 0.0
    %v1530 = vand.u32 %v135, 4294901760
    %1531 = vmatpush2.msra.mxu0 %v1530
    %1532 = vmatprep.subr.mxu0 0.0
    %v1533 = vand.u32 %v134, 4294901760
    %1534 = vmatpush2.msra.mxu0 %v1533
    %1535 = vmatprep.subr.mxu0 0.0
    %v1536 = vand.u32 %v133, 4294901760
    %1537 = vmatpush2.msra.mxu0 %v1536
    %1538 = vmatprep.subr.mxu0 0.0
    %v1539 = vand.u32 %v132, 4294901760
    %1540 = vmatpush2.msra.mxu0 %v1539
    %1541 = vmatprep.subr.mxu0 0.0
    %v1542 = vand.u32 %v131, 4294901760
    %1543 = vmatpush2.msra.mxu0 %v1542
    %1544 = vmatprep.subr.mxu0 0.0
    %v1545 = vand.u32 %v130, 4294901760
    %1546 = vmatpush2.msra.mxu0 %v1545
    %1547 = vmatprep.subr.mxu0 0.0
    %v1548 = vand.u32 %v129, 4294901760
    %1549 = vmatpush2.msra.mxu0 %v1548
    %1550 = vmatprep.subr.mxu0 0.0
    %v1551 = vand.u32 %v128, 4294901760
    %1552 = vmatpush2.msra.mxu0 %v1551
    %1553 = vmatprep.subr.mxu0 0.0
    %v1554 = vand.u32 %v127, 4294901760
    %1555 = vmatpush2.msra.mxu0 %v1554
    %1556 = vmatprep.subr.mxu0 0.0
    %v1557 = vand.u32 %v126, 4294901760
    %1558 = vmatpush2.msra.mxu0 %v1557
    %1559 = vmatprep.subr.mxu0 0.0
    %v1560 = vand.u32 %v125, 4294901760
    %1561 = vmatpush2.msra.mxu0 %v1560
    %1562 = vmatprep.subr.mxu0 0.0
    %v1563 = vand.u32 %v124, 4294901760
    %1564 = vmatpush2.msra.mxu0 %v1563
    %1565 = vmatprep.subr.mxu0 0.0
    %v1566 = vand.u32 %v123, 4294901760
    %1567 = vmatpush2.msra.mxu0 %v1566
    %1568 = vmatprep.subr.mxu0 0.0
    %v1569 = vand.u32 %v122, 4294901760
    %1570 = vmatpush2.msra.mxu0 %v1569
    %1571 = vmatprep.subr.mxu0 0.0
    %v1572 = vand.u32 %v121, 4294901760
    %1573 = vmatpush2.msra.mxu0 %v1572
    %1574 = vmatprep.subr.mxu0 0.0
    %v1575 = vand.u32 %v120, 4294901760
    %1576 = vmatpush2.msra.mxu0 %v1575
    %v1577 = vand.u32 %v71, 4294901760
    %v1578 = vsub.f32 %v71, %v1577
    %v1579 = vand.u32 %v1578, 4294901760
    %1580 = vmatprep.mubr.f32.mxu0 %v1579
    %v1581 = vand.u32 %v70, 4294901760
    %v1582 = vsub.f32 %v70, %v1581
    %v1583 = vand.u32 %v1582, 4294901760
    %1584 = vmatmul.mubr.f32.gmra.mxu0 %v1583
    %v1585 = vpop.f32.mrf.mxu0
    %v1586 = vadd.f32 %v1478, %v1585
    %v1587 = vpop.f32.mrf.mxu0
    %1588 = vdwg.mxu0
    %1589 = vmatprep.subr.mxu0 0.0
    %v1590 = vand.u32 %v119, 4294901760
    %v1591 = vsub.f32 %v119, %v1590
    %v1592 = vand.u32 %v1591, 4294901760
    %1593 = vmatpush1.msra.mxu0 %v1592
    %1594 = vmatprep.subr.mxu0 0.0
    %v1595 = vand.u32 %v118, 4294901760
    %v1596 = vsub.f32 %v118, %v1595
    %v1597 = vand.u32 %v1596, 4294901760
    %1598 = vmatpush1.msra.mxu0 %v1597
    %1599 = vmatprep.subr.mxu0 0.0
    %v1600 = vand.u32 %v117, 4294901760
    %v1601 = vsub.f32 %v117, %v1600
    %v1602 = vand.u32 %v1601, 4294901760
    %1603 = vmatpush1.msra.mxu0 %v1602
    %1604 = vmatprep.subr.mxu0 0.0
    %v1605 = vand.u32 %v116, 4294901760
    %v1606 = vsub.f32 %v116, %v1605
    %v1607 = vand.u32 %v1606, 4294901760
    %1608 = vmatpush1.msra.mxu0 %v1607
    %1609 = vmatprep.subr.mxu0 0.0
    %v1610 = vand.u32 %v115, 4294901760
    %v1611 = vsub.f32 %v115, %v1610
    %v1612 = vand.u32 %v1611, 4294901760
    %1613 = vmatpush1.msra.mxu0 %v1612
    %1614 = vmatprep.subr.mxu0 0.0
    %v1615 = vand.u32 %v114, 4294901760
    %v1616 = vsub.f32 %v114, %v1615
    %v1617 = vand.u32 %v1616, 4294901760
    %1618 = vmatpush1.msra.mxu0 %v1617
    %1619 = vmatprep.subr.mxu0 0.0
    %v1620 = vand.u32 %v113, 4294901760
    %v1621 = vsub.f32 %v113, %v1620
    %v1622 = vand.u32 %v1621, 4294901760
    %1623 = vmatpush1.msra.mxu0 %v1622
    %1624 = vmatprep.subr.mxu0 0.0
    %v1625 = vand.u32 %v112, 4294901760
    %v1626 = vsub.f32 %v112, %v1625
    %v1627 = vand.u32 %v1626, 4294901760
    %1628 = vmatpush1.msra.mxu0 %v1627
    %1629 = vmatprep.subr.mxu0 0.0
    %v1630 = vand.u32 %v111, 4294901760
    %v1631 = vsub.f32 %v111, %v1630
    %v1632 = vand.u32 %v1631, 4294901760
    %1633 = vmatpush1.msra.mxu0 %v1632
    %1634 = vmatprep.subr.mxu0 0.0
    %v1635 = vand.u32 %v110, 4294901760
    %v1636 = vsub.f32 %v110, %v1635
    %v1637 = vand.u32 %v1636, 4294901760
    %1638 = vmatpush1.msra.mxu0 %v1637
    %1639 = vmatprep.subr.mxu0 0.0
    %v1640 = vand.u32 %v109, 4294901760
    %v1641 = vsub.f32 %v109, %v1640
    %v1642 = vand.u32 %v1641, 4294901760
    %1643 = vmatpush1.msra.mxu0 %v1642
    %1644 = vmatprep.subr.mxu0 0.0
    %v1645 = vand.u32 %v108, 4294901760
    %v1646 = vsub.f32 %v108, %v1645
    %v1647 = vand.u32 %v1646, 4294901760
    %1648 = vmatpush1.msra.mxu0 %v1647
    %1649 = vmatprep.subr.mxu0 0.0
    %v1650 = vand.u32 %v107, 4294901760
    %v1651 = vsub.f32 %v107, %v1650
    %v1652 = vand.u32 %v1651, 4294901760
    %1653 = vmatpush1.msra.mxu0 %v1652
    %1654 = vmatprep.subr.mxu0 0.0
    %v1655 = vand.u32 %v106, 4294901760
    %v1656 = vsub.f32 %v106, %v1655
    %v1657 = vand.u32 %v1656, 4294901760
    %1658 = vmatpush1.msra.mxu0 %v1657
    %1659 = vmatprep.subr.mxu0 0.0
    %v1660 = vand.u32 %v105, 4294901760
    %v1661 = vsub.f32 %v105, %v1660
    %v1662 = vand.u32 %v1661, 4294901760
    %1663 = vmatpush1.msra.mxu0 %v1662
    %1664 = vmatprep.subr.mxu0 0.0
    %v1665 = vand.u32 %v104, 4294901760
    %v1666 = vsub.f32 %v104, %v1665
    %v1667 = vand.u32 %v1666, 4294901760
    %1668 = vmatpush1.msra.mxu0 %v1667
    %1669 = vmatprep.subr.mxu0 0.0
    %v1670 = vand.u32 %v135, 4294901760
    %v1671 = vsub.f32 %v135, %v1670
    %v1672 = vand.u32 %v1671, 4294901760
    %1673 = vmatpush2.msra.mxu0 %v1672
    %1674 = vmatprep.subr.mxu0 0.0
    %v1675 = vand.u32 %v134, 4294901760
    %v1676 = vsub.f32 %v134, %v1675
    %v1677 = vand.u32 %v1676, 4294901760
    %1678 = vmatpush2.msra.mxu0 %v1677
    %1679 = vmatprep.subr.mxu0 0.0
    %v1680 = vand.u32 %v133, 4294901760
    %v1681 = vsub.f32 %v133, %v1680
    %v1682 = vand.u32 %v1681, 4294901760
    %1683 = vmatpush2.msra.mxu0 %v1682
    %1684 = vmatprep.subr.mxu0 0.0
    %v1685 = vand.u32 %v132, 4294901760
    %v1686 = vsub.f32 %v132, %v1685
    %v1687 = vand.u32 %v1686, 4294901760
    %1688 = vmatpush2.msra.mxu0 %v1687
    %1689 = vmatprep.subr.mxu0 0.0
    %v1690 = vand.u32 %v131, 4294901760
    %v1691 = vsub.f32 %v131, %v1690
    %v1692 = vand.u32 %v1691, 4294901760
    %1693 = vmatpush2.msra.mxu0 %v1692
    %1694 = vmatprep.subr.mxu0 0.0
    %v1695 = vand.u32 %v130, 4294901760
    %v1696 = vsub.f32 %v130, %v1695
    %v1697 = vand.u32 %v1696, 4294901760
    %1698 = vmatpush2.msra.mxu0 %v1697
    %1699 = vmatprep.subr.mxu0 0.0
    %v1700 = vand.u32 %v129, 4294901760
    %v1701 = vsub.f32 %v129, %v1700
    %v1702 = vand.u32 %v1701, 4294901760
    %1703 = vmatpush2.msra.mxu0 %v1702
    %1704 = vmatprep.subr.mxu0 0.0
    %v1705 = vand.u32 %v128, 4294901760
    %v1706 = vsub.f32 %v128, %v1705
    %v1707 = vand.u32 %v1706, 4294901760
    %1708 = vmatpush2.msra.mxu0 %v1707
    %1709 = vmatprep.subr.mxu0 0.0
    %v1710 = vand.u32 %v127, 4294901760
    %v1711 = vsub.f32 %v127, %v1710
    %v1712 = vand.u32 %v1711, 4294901760
    %1713 = vmatpush2.msra.mxu0 %v1712
    %1714 = vmatprep.subr.mxu0 0.0
    %v1715 = vand.u32 %v126, 4294901760
    %v1716 = vsub.f32 %v126, %v1715
    %v1717 = vand.u32 %v1716, 4294901760
    %1718 = vmatpush2.msra.mxu0 %v1717
    %1719 = vmatprep.subr.mxu0 0.0
    %v1720 = vand.u32 %v125, 4294901760
    %v1721 = vsub.f32 %v125, %v1720
    %v1722 = vand.u32 %v1721, 4294901760
    %1723 = vmatpush2.msra.mxu0 %v1722
    %1724 = vmatprep.subr.mxu0 0.0
    %v1725 = vand.u32 %v124, 4294901760
    %v1726 = vsub.f32 %v124, %v1725
    %v1727 = vand.u32 %v1726, 4294901760
    %1728 = vmatpush2.msra.mxu0 %v1727
    %1729 = vmatprep.subr.mxu0 0.0
    %v1730 = vand.u32 %v123, 4294901760
    %v1731 = vsub.f32 %v123, %v1730
    %v1732 = vand.u32 %v1731, 4294901760
    %1733 = vmatpush2.msra.mxu0 %v1732
    %1734 = vmatprep.subr.mxu0 0.0
    %v1735 = vand.u32 %v122, 4294901760
    %v1736 = vsub.f32 %v122, %v1735
    %v1737 = vand.u32 %v1736, 4294901760
    %1738 = vmatpush2.msra.mxu0 %v1737
    %1739 = vmatprep.subr.mxu0 0.0
    %v1740 = vand.u32 %v121, 4294901760
    %v1741 = vsub.f32 %v121, %v1740
    %v1742 = vand.u32 %v1741, 4294901760
    %1743 = vmatpush2.msra.mxu0 %v1742
    %1744 = vmatprep.subr.mxu0 0.0
    %v1745 = vand.u32 %v120, 4294901760
    %v1746 = vsub.f32 %v120, %v1745
    %v1747 = vand.u32 %v1746, 4294901760
    %1748 = vmatpush2.msra.mxu0 %v1747
    %v1749 = vand.u32 %v71, 4294901760
    %1750 = vmatprep.mubr.f32.mxu0 %v1749
    %v1751 = vand.u32 %v70, 4294901760
    %1752 = vmatmul.mubr.f32.gmra.mxu0 %v1751
    %v1753 = vpop.f32.mrf.mxu0
    %v1754 = vadd.f32 %v1586, %v1753
    %v1755 = vpop.f32.mrf.mxu0
    %1756 = vdwg.mxu0
    %1757 = vmatprep.subr.mxu0 0.0
    %v1758 = vand.u32 %v119, 4294901760
    %1759 = vmatpush1.msra.mxu0 %v1758
    %1760 = vmatprep.subr.mxu0 0.0
    %v1761 = vand.u32 %v118, 4294901760
    %1762 = vmatpush1.msra.mxu0 %v1761
    %1763 = vmatprep.subr.mxu0 0.0
    %v1764 = vand.u32 %v117, 4294901760
    %1765 = vmatpush1.msra.mxu0 %v1764
    %1766 = vmatprep.subr.mxu0 0.0
    %v1767 = vand.u32 %v116, 4294901760
    %1768 = vmatpush1.msra.mxu0 %v1767
    %1769 = vmatprep.subr.mxu0 0.0
    %v1770 = vand.u32 %v115, 4294901760
    %1771 = vmatpush1.msra.mxu0 %v1770
    %1772 = vmatprep.subr.mxu0 0.0
    %v1773 = vand.u32 %v114, 4294901760
    %1774 = vmatpush1.msra.mxu0 %v1773
    %1775 = vmatprep.subr.mxu0 0.0
    %v1776 = vand.u32 %v113, 4294901760
    %1777 = vmatpush1.msra.mxu0 %v1776
    %1778 = vmatprep.subr.mxu0 0.0
    %v1779 = vand.u32 %v112, 4294901760
    %1780 = vmatpush1.msra.mxu0 %v1779
    %1781 = vmatprep.subr.mxu0 0.0
    %v1782 = vand.u32 %v111, 4294901760
    %1783 = vmatpush1.msra.mxu0 %v1782
    %1784 = vmatprep.subr.mxu0 0.0
    %v1785 = vand.u32 %v110, 4294901760
    %1786 = vmatpush1.msra.mxu0 %v1785
    %1787 = vmatprep.subr.mxu0 0.0
    %v1788 = vand.u32 %v109, 4294901760
    %1789 = vmatpush1.msra.mxu0 %v1788
    %1790 = vmatprep.subr.mxu0 0.0
    %v1791 = vand.u32 %v108, 4294901760
    %1792 = vmatpush1.msra.mxu0 %v1791
    %1793 = vmatprep.subr.mxu0 0.0
    %v1794 = vand.u32 %v107, 4294901760
    %1795 = vmatpush1.msra.mxu0 %v1794
    %1796 = vmatprep.subr.mxu0 0.0
    %v1797 = vand.u32 %v106, 4294901760
    %1798 = vmatpush1.msra.mxu0 %v1797
    %1799 = vmatprep.subr.mxu0 0.0
    %v1800 = vand.u32 %v105, 4294901760
    %1801 = vmatpush1.msra.mxu0 %v1800
    %1802 = vmatprep.subr.mxu0 0.0
    %v1803 = vand.u32 %v104, 4294901760
    %1804 = vmatpush1.msra.mxu0 %v1803
    %1805 = vmatprep.subr.mxu0 0.0
    %v1806 = vand.u32 %v135, 4294901760
    %1807 = vmatpush2.msra.mxu0 %v1806
    %1808 = vmatprep.subr.mxu0 0.0
    %v1809 = vand.u32 %v134, 4294901760
    %1810 = vmatpush2.msra.mxu0 %v1809
    %1811 = vmatprep.subr.mxu0 0.0
    %v1812 = vand.u32 %v133, 4294901760
    %1813 = vmatpush2.msra.mxu0 %v1812
    %1814 = vmatprep.subr.mxu0 0.0
    %v1815 = vand.u32 %v132, 4294901760
    %1816 = vmatpush2.msra.mxu0 %v1815
    %1817 = vmatprep.subr.mxu0 0.0
    %v1818 = vand.u32 %v131, 4294901760
    %1819 = vmatpush2.msra.mxu0 %v1818
    %1820 = vmatprep.subr.mxu0 0.0
    %v1821 = vand.u32 %v130, 4294901760
    %1822 = vmatpush2.msra.mxu0 %v1821
    %1823 = vmatprep.subr.mxu0 0.0
    %v1824 = vand.u32 %v129, 4294901760
    %1825 = vmatpush2.msra.mxu0 %v1824
    %1826 = vmatprep.subr.mxu0 0.0
    %v1827 = vand.u32 %v128, 4294901760
    %1828 = vmatpush2.msra.mxu0 %v1827
    %1829 = vmatprep.subr.mxu0 0.0
    %v1830 = vand.u32 %v127, 4294901760
    %1831 = vmatpush2.msra.mxu0 %v1830
    %1832 = vmatprep.subr.mxu0 0.0
    %v1833 = vand.u32 %v126, 4294901760
    %1834 = vmatpush2.msra.mxu0 %v1833
    %1835 = vmatprep.subr.mxu0 0.0
    %v1836 = vand.u32 %v125, 4294901760
    %1837 = vmatpush2.msra.mxu0 %v1836
    %1838 = vmatprep.subr.mxu0 0.0
    %v1839 = vand.u32 %v124, 4294901760
    %1840 = vmatpush2.msra.mxu0 %v1839
    %1841 = vmatprep.subr.mxu0 0.0
    %v1842 = vand.u32 %v123, 4294901760
    %1843 = vmatpush2.msra.mxu0 %v1842
    %1844 = vmatprep.subr.mxu0 0.0
    %v1845 = vand.u32 %v122, 4294901760
    %1846 = vmatpush2.msra.mxu0 %v1845
    %1847 = vmatprep.subr.mxu0 0.0
    %v1848 = vand.u32 %v121, 4294901760
    %1849 = vmatpush2.msra.mxu0 %v1848
    %1850 = vmatprep.subr.mxu0 0.0
    %v1851 = vand.u32 %v120, 4294901760
    %1852 = vmatpush2.msra.mxu0 %v1851
    %v1853 = vand.u32 %v71, 4294901760
    %1854 = vmatprep.mubr.f32.mxu0 %v1853
    %v1855 = vand.u32 %v70, 4294901760
    %1856 = vmatmul.mubr.f32.gmra.mxu0 %v1855
    %v1857 = vpop.f32.mrf.mxu0
    %v1858 = vadd.f32 %v1754, %v1857
    %v1859 = vpop.f32.mrf.mxu0
    %1860 = vdwg.mxu0
    %v1861 = vadd.f32 %v136, %v1858
    %1862 = vst [vmem:[#allocation5] sm:$0xf] %v1861
    // Predicated region
    $region22: #{tpu_custom_call.1} parent=1 // pred_check
      %p1863 = pneg %p29
    $region23: #{tpu_custom_call.1} parent=1 // pred_check_branch
      %1865 = sbr.rel (%p1863) target = $region25
    $region24: #{tpu_custom_call.1} parent=1 // pred_region
      %v1866 = vld [vmem:[#allocation5] sm:$0xf]
      %v1867 = vld [vmem:[%s1] sm:$0xf]
      %1869 = vset.pattern.permute.xlu0 0
      %1870 = vperm.xlu0 %1869, %v1867
      %v1871 = vpop.permute.xlu0 %1870
      %v1873 = vmul.f32 %v1866, %v1871
      %1874 = vst [vmem:[#allocation5] sm:$0xf] %v1873
    $region25: #{tpu_custom_call.1} parent=1 // pred_fallthru
      _
    // Predicated region
    $region26: #{tpu_custom_call.1} parent=1 // pred_check
      _
    $region27: #{tpu_custom_call.1} parent=1 // pred_check_branch
      %1876 = sbr.rel (0) target = $region29
    $region28: #{tpu_custom_call.1} parent=1 // pred_region
      %s1878 = ssub.s32 64, 64
      %1879 = vsyncadd [#allocation4], %s1878
      %s1881 = sshll.u32 [#allocation5], 4
      %s1882 = int_to_ptr.vmem [resolvable:$true] %s1881
      %1884 = dma.vmem_to_hbm [thread:$0]  %s1882, 64, %s3, [#allocation4]
    $region29: #{tpu_custom_call.1} parent=1 // pred_fallthru
      _
    // Predicated region
    $region30: #{tpu_custom_call.1} parent=1 // pred_check
      _
    $region31: #{tpu_custom_call.1} parent=1 // pred_check_branch
      %1886 = sbr.rel (0) target = $region33
    $region32: #{tpu_custom_call.1} parent=1 // pred_region
      %1887 = dma.done [#allocation4], 64
    $region33: #{tpu_custom_call.1} parent=1 // pred_fallthru
      _
    %1888 = vsyncpa [#allocation3], 1
    %1889 = vsyncpa [#allocation4], 1

</llo_original>
